<compile_context>
chip_gen: v5e
topology: v5e:2x2
jax: 0.10.0
libtpu: 0.0.40
codegen_flags: <defaults>
</compile_context>

<pallas_src>
import jax
import jax.numpy as jnp
from jax.experimental import pallas as pl
from jax.experimental.pallas import tpu as pltpu


def _round_up(v, m):
    return ((v + m - 1) // m) * m


def _vmem_capacity_bytes():
    """Chip VMEM capacity; conservative 64 MiB (v7x per-core) fallback."""
    try:
        return int(pltpu.get_tpu_info().vmem_capacity_bytes)
    except Exception:
        return 64 * 1024 * 1024


# -----------------------------------------------------------------------------
# Pallas kernel 1: per-frame encoder (genc), mean-pool folded into the GEMM.
#   x:   (TILE_N, C*HW) f32 (read straight from HBM, no boundary cast)
#   wg:  (C*HW, E_pad)  bf16, pre-divided by HW   -> dot == mean-pool + linear
#   bg:  (1, E_pad)     f32
#   z:   relu(x @ wg + bg)   (TILE_N, E_pad) f32
# -----------------------------------------------------------------------------
def genc_kernel(x_ref, wg_ref, bg_ref, z_ref):
    # cast only the MXU operand to bf16 (f32 stays in HBM/VMEM), f32 accumulate
    x = x_ref[...].astype(jnp.bfloat16)
    z = jnp.dot(x, wg_ref[...], preferred_element_type=jnp.float32) + bg_ref[...]
    z_ref[...] = jnp.maximum(z, 0.0)


def _pick_tile_n(n, row_bytes, budget_bytes):
    """Largest power-of-two row tile whose input buffer fits the per-buffer
    budget (safe with double buffering), never larger than padded n."""
    max_rows = max(8, budget_bytes // max(row_bytes, 1))
    tile = 8
    for cand in (2048, 1024, 512, 256, 128, 64, 32, 16, 8):
        if cand <= max_rows:
            tile = cand
            break
    return min(tile, _round_up(n, 8))


def run_genc(x_2d, wg, bg):
    """x_2d: (N, C*HW) f32.  wg: (C, E), bg: (1, E).  Returns (N, E) f32."""
    n, chw = x_2d.shape
    c, e = wg.shape
    hw = chw // c
    e_pad = _round_up(e, 128)

    # fold the spatial mean into the weight: wg_exp[c*HW + s, e] = wg[c, e]/HW
    wg_exp = jnp.repeat(wg / jnp.float32(hw), hw, axis=0)         # (C*HW, E)
    wg_exp = jnp.pad(wg_exp, ((0, 0), (0, e_pad - e))).astype(jnp.bfloat16)
    bg_p = jnp.pad(bg, ((0, 0), (0, e_pad - e)))

    vmem_cap = _vmem_capacity_bytes()
    budget = max(vmem_cap // 8, 4 * 1024 * 1024)       # per input buffer
    vmem_limit = max(vmem_cap // 2, 32 * 1024 * 1024)  # scoped limit

    tile_n = _pick_tile_n(n, chw * 4, budget)
    n_pad = _round_up(n, tile_n)
    if n_pad != n:
        x_2d = jnp.pad(x_2d, ((0, n_pad - n), (0, 0)))
    grid = (n_pad // tile_n,)

    flops = 2 * n_pad * chw * e_pad
    bytes_accessed = (n_pad * chw * 4            # x f32
                      + chw * e_pad * 2          # wg bf16
                      + e_pad * 4                # bias
                      + n_pad * e_pad * 4)       # z f32

    z = pl.pallas_call(
        genc_kernel,
        out_shape=jax.ShapeDtypeStruct((n_pad, e_pad), jnp.float32),
        grid=grid,
        in_specs=[
            pl.BlockSpec((tile_n, chw), lambda i: (i, 0)),
            pl.BlockSpec((chw, e_pad), lambda i: (0, 0)),
            pl.BlockSpec((1, e_pad), lambda i: (0, 0)),
        ],
        out_specs=pl.BlockSpec((tile_n, e_pad), lambda i: (i, 0)),
        compiler_params=pltpu.CompilerParams(
            dimension_semantics=("parallel",),
            vmem_limit_bytes=vmem_limit),
        cost_estimate=pl.CostEstimate(flops=flops, transcendentals=0,
                                      bytes_accessed=bytes_accessed),
    )(x_2d, wg_exp, bg_p)
    return z[:n, :e]


# -----------------------------------------------------------------------------
# Pallas kernel 2: gar GRU recurrence (grid over T, hidden state in VMEM).
#   xr/xz/xn: (T, B, H) precomputed input projections (hoisted GEMM outside)
#   whr/whz/whn: (H, H); bhr/bhz/bhn: (1, H)
#   out: (T, B, H) hidden state for every step
# -----------------------------------------------------------------------------
def gru_step_kernel(xr_ref, xz_ref, xn_ref, whr_ref, whz_ref, whn_ref,
                    bhr_ref, bhz_ref, bhn_ref, h_out_ref, h_scr):
    t = pl.program_id(0)

    @pl.when(t == 0)
    def _():
        h_scr[...] = jnp.zeros_like(h_scr)

    h = h_scr[...]                                            # (B, H)
    hr = jnp.dot(h, whr_ref[...], preferred_element_type=jnp.float32) + bhr_ref[...]
    hz = jnp.dot(h, whz_ref[...], preferred_element_type=jnp.float32) + bhz_ref[...]
    hn = jnp.dot(h, whn_ref[...], preferred_element_type=jnp.float32) + bhn_ref[...]

    r = jax.nn.sigmoid(xr_ref[0] + hr)
    u = jax.nn.sigmoid(xz_ref[0] + hz)
    n = jnp.tanh(xn_ref[0] + r * hn)
    h_new = (1.0 - u) * n + u * h

    h_scr[...] = h_new
    h_out_ref[0] = h_new


def gru_forward(z_seq, params):
    """z_seq: (B, T, E) f32 -> hidden states (B, T, H) f32."""
    (wir, wiz, win, whr, whz, whn, bir, biz, binn, bhr, bhz, bhn) = params
    B, T, E = z_seq.shape
    H = whr.shape[0]

    # hoisted input projections: one (B*T, E) x (E, 3H) GEMM outside the scan
    w_i = jnp.concatenate([wir, wiz, win], axis=1)            # (E, 3H)
    b_i = jnp.concatenate([bir, biz, binn], axis=0)           # (3H,)
    x_proj = z_seq.reshape(B * T, E) @ w_i + b_i              # (B*T, 3H)
    x_proj = x_proj.reshape(B, T, 3, H).transpose(1, 0, 2, 3) # (T, B, 3, H)
    xr_all = x_proj[:, :, 0, :]
    xz_all = x_proj[:, :, 1, :]
    xn_all = x_proj[:, :, 2, :]

    seq_spec = pl.BlockSpec((1, B, H), lambda t: (t, 0, 0))
    w_spec = pl.BlockSpec((H, H), lambda t: (0, 0))
    b_spec = pl.BlockSpec((1, H), lambda t: (0, 0))

    hs = pl.pallas_call(
        gru_step_kernel,
        out_shape=jax.ShapeDtypeStruct((T, B, H), jnp.float32),
        grid=(T,),
        in_specs=[seq_spec, seq_spec, seq_spec,
                  w_spec, w_spec, w_spec,
                  b_spec, b_spec, b_spec],
        out_specs=pl.BlockSpec((1, B, H), lambda t: (t, 0, 0)),
        scratch_shapes=[pltpu.VMEM((B, H), jnp.float32)],
        compiler_params=pltpu.CompilerParams(
            dimension_semantics=("arbitrary",),
            vmem_limit_bytes=32 * 1024 * 1024),
    )(xr_all, xz_all, xn_all, whr, whz, whn,
      bhr.reshape(1, H), bhz.reshape(1, H), bhn.reshape(1, H))
    return jnp.swapaxes(hs, 0, 1)                             # (B, T, H)


# -----------------------------------------------------------------------------
# Pallas kernel 3: fused classifier head
#   c_shift / z pre-flattened in the wrapper to (B*T, Cd)/(B*T, Zd)
#   h1 = c_shift @ W1_c + z @ W1_z + b1   (split matmul, no lane concat, bf16 MXU)
#   h1 = BatchNorm1d(h1) (training-mode batch stats, centered variance, eps=1e-5)
#   h1 = relu(h1)
#   y  = h1 @ W2_pad + b2_pad             (128-lane padded output, unmasked vst)
# Hidden and class dims are padded to 128 lanes; padded lanes stay exactly zero
# (gamma / beta / W2-row padding is zero).
# -----------------------------------------------------------------------------
def head_kernel(cs_ref, z_ref, w1c_ref, w1z_ref, b1_ref, gamma_ref, beta_ref,
                w2_ref, b2_ref, y_ref):
    n_rows = cs_ref.shape[0]

    c2 = cs_ref[...].astype(jnp.bfloat16)
    z2 = z_ref[...].astype(jnp.bfloat16)

    h1 = (jnp.dot(c2, w1c_ref[...].astype(jnp.bfloat16),
                  preferred_element_type=jnp.float32)
          + jnp.dot(z2, w1z_ref[...].astype(jnp.bfloat16),
                    preferred_element_type=jnp.float32)
          + b1_ref[...])

    # BatchNorm1d, training mode: biased stats with a centered second pass
    inv_n = jnp.float32(1.0 / n_rows)
    mean = jnp.sum(h1, axis=0, keepdims=True) * inv_n
    centered = h1 - mean
    var = jnp.sum(centered * centered, axis=0, keepdims=True) * inv_n
    inv_std = jax.lax.rsqrt(var + 1e-5)                    # EUP rsqrt
    h1 = centered * (inv_std * gamma_ref[...]) + beta_ref[...]

    h1 = jnp.maximum(h1, 0.0)

    y = jnp.dot(h1.astype(jnp.bfloat16), w2_ref[...].astype(jnp.bfloat16),
                preferred_element_type=jnp.float32) + b2_ref[...]
    y_ref[...] = y


def run_head(c_all, z_t, w1, b1, gamma, beta, w2, b2):
    B, T, Cd = c_all.shape
    Zd = z_t.shape[-1]
    hid = w1.shape[1]
    ncls = w2.shape[1]

    # temporal shift (c_t_1[:, 0] = 0) precomputed in the wrapper: no in-kernel
    # sublane concat / relayout copies.
    c_shift = jnp.pad(c_all[:, :-1, :], ((0, 0), (1, 0), (0, 0)))
    cs2 = c_shift.reshape(B * T, Cd)
    z2 = z_t.reshape(B * T, Zd)

    hid_pad = _round_up(hid, 128)
    ncls_pad = _round_up(ncls, 128)

    # split W1 so the kernel never concatenates along the lane axis; pad the
    # hidden dim to 128 lanes (gamma padded with ZERO so padded lanes stay 0).
    w1c = jnp.pad(w1[:Cd], ((0, 0), (0, hid_pad - hid)))
    w1z = jnp.pad(w1[Cd:], ((0, 0), (0, hid_pad - hid)))
    b1p = jnp.pad(b1, ((0, 0), (0, hid_pad - hid)))
    gammap = jnp.pad(gamma, ((0, 0), (0, hid_pad - hid)))
    betap = jnp.pad(beta, ((0, 0), (0, hid_pad - hid)))
    w2p = jnp.pad(w2, ((0, hid_pad - hid), (0, ncls_pad - ncls)))
    b2p = jnp.pad(b2, ((0, 0), (0, ncls_pad - ncls)))

    # TODO(synk): for large B*T, split into a two-pass (stats + apply) design
    #             with a row grid so it pipelines and shards across v7x cores.
    vmem = pl.BlockSpec(memory_space=pltpu.MemorySpace.VMEM)
    y = pl.pallas_call(
        head_kernel,
        out_shape=jax.ShapeDtypeStruct((B * T, ncls_pad), jnp.float32),
        in_specs=[vmem] * 9,
        out_specs=vmem,
        compiler_params=pltpu.CompilerParams(
            vmem_limit_bytes=32 * 1024 * 1024),
    )(cs2, z2, w1c, w1z, b1p, gammap, betap, w2p, b2p)
    return y[:, :ncls].reshape(B, T, ncls)


# -----------------------------------------------------------------------------
# Parameter construction (deterministic, synthetic)
# -----------------------------------------------------------------------------
def make_params(key, channels, emb_dim, gar_hidden_dim, mlp_hidden_dim,
                num_classes):
    ks = jax.random.split(key, 20)

    def uni(k, shape, fan_in):
        bound = 1.0 / jnp.sqrt(jnp.float32(fan_in))
        return jax.random.uniform(k, shape, jnp.float32, -bound, bound)

    p = {}
    # genc
    p["wg"] = uni(ks[0], (channels, emb_dim), channels)
    p["bg"] = uni(ks[1], (1, emb_dim), channels)
    # gar (GRU)
    H, E = gar_hidden_dim, emb_dim
    p["gru"] = (
        uni(ks[2], (E, H), H), uni(ks[3], (E, H), H), uni(ks[4], (E, H), H),
        uni(ks[5], (H, H), H), uni(ks[6], (H, H), H), uni(ks[7], (H, H), H),
        uni(ks[8], (H,), H), uni(ks[9], (H,), H), uni(ks[10], (H,), H),
        uni(ks[11], (H,), H), uni(ks[12], (H,), H), uni(ks[13], (H,), H),
    )
    # MLP head
    in_dim = emb_dim + gar_hidden_dim
    p["w1"] = uni(ks[14], (in_dim, mlp_hidden_dim), in_dim)
    p["b1"] = uni(ks[15], (1, mlp_hidden_dim), in_dim)
    p["gamma"] = jnp.ones((1, mlp_hidden_dim), jnp.float32)
    p["beta"] = jnp.zeros((1, mlp_hidden_dim), jnp.float32)
    p["w2"] = uni(ks[16], (mlp_hidden_dim, num_classes), mlp_hidden_dim)
    p["b2"] = uni(ks[17], (1, num_classes), mlp_hidden_dim)
    return p


# -----------------------------------------------------------------------------
# Full forward pass
# -----------------------------------------------------------------------------
@jax.jit
def cpc_multitemporal_classifier_forward(x, params):
    """x: (bs, seq_len, c, h, w) float32.

    Returns dict with y_pred: (bs, seq_len, num_classes),
    z_t: (bs, seq_len, emb_dim), c: (bs, seq_len, gar_hidden_dim).
    """
    bs, seq_len, c, h, w = x.shape

    # --- CPC: genc per frame (Pallas; f32 read, bf16 MXU, mean folded in) ---
    x_2d = x.reshape(bs * seq_len, c * h * w)                   # no dtype cast
    z_flat = run_genc(x_2d, params["wg"], params["bg"])         # (bs*T, E)
    z_t = z_flat.reshape(bs, seq_len, -1)

    # --- CPC: gar GRU over time (Pallas recurrence, hoisted input GEMM) ---
    c_all = gru_forward(z_t, params["gru"])                     # (bs, T, H)

    # --- classifier head: shift/pad + split-matmul MLP (Pallas kernel) ---
    y_pred = run_head(c_all, z_t,
                      params["w1"], params["b1"],
                      params["gamma"], params["beta"],
                      params["w2"], params["b2"])               # (bs, T, ncls)

    return {"y_pred": y_pred, "z_t": z_t, "c": c_all, "c_t": c_all[:, -1, :]}


if __name__ == "__main__":
    # small shapes consistent with the module's forward
    bs, seq_len, channels, H, W = 2, 8, 4, 16, 16
    emb_dim = 32          # cpc.genc.emb_dim
    gar_hidden_dim = 32
    mlp_hidden_dim = 64
    num_classes = 10

    key = jax.random.PRNGKey(0)
    kx, kp = jax.random.split(key)
    x = jax.random.normal(kx, (bs, seq_len, channels, H, W), jnp.float32)
    params = make_params(kp, channels, emb_dim, gar_hidden_dim,
                         mlp_hidden_dim, num_classes)

    out = cpc_multitemporal_classifier_forward(x, params)
    jax.block_until_ready(out)

    assert out["y_pred"].shape == (bs, seq_len, num_classes)
    assert out["z_t"].shape == (bs, seq_len, emb_dim)
    assert out["c"].shape == (bs, seq_len, gar_hidden_dim)
    print("KERNEL_OK")
</pallas_src>

<mosaic_0001>
module attributes {stable_mosaic.version = 11 : i64} {
  func.func @genc_kernel(%arg0: i32, %arg1: memref<16x1024xf32, #tpu.memory_space<vmem>>, %arg2: memref<1024x128xbf16, #tpu.memory_space<vmem>>, %arg3: memref<1x128xf32, #tpu.memory_space<vmem>>, %arg4: memref<16x128xf32, #tpu.memory_space<vmem>>) attributes {dimension_semantics = [#tpu.dimension_semantics<parallel>], iteration_bounds = array<i64: 1>, scalar_prefetch = 0 : i64, scratch_operands = 0 : i64, tpu.core_type = #tpu.core_type<tc>, window_params = [{transform_indices = @transform_0, window_bounds = array<i64: 16, 1024>}, {pipeline_mode = #tpu.pipeline_mode<synchronous>, transform_indices = @transform_1, window_bounds = array<i64: 1024, 128>}, {pipeline_mode = #tpu.pipeline_mode<synchronous>, transform_indices = @transform_2, window_bounds = array<i64: 1, 128>}, {transform_indices = @transform_3, window_bounds = array<i64: 16, 128>}]} {
    %c0 = arith.constant 0 : index
    %c0_0 = arith.constant 0 : index
    %0 = vector.load %arg1[%c0, %c0_0] : memref<16x1024xf32, #tpu.memory_space<vmem>>, vector<16x1024xf32>
    %1 = arith.truncf %0 : vector<16x1024xf32> to vector<16x1024xbf16>
    %c0_1 = arith.constant 0 : index
    %c0_2 = arith.constant 0 : index
    %2 = vector.load %arg2[%c0_1, %c0_2] : memref<1024x128xbf16, #tpu.memory_space<vmem>>, vector<1024x128xbf16>
    %cst = arith.constant dense<0.000000e+00> : vector<16x128xf32>
    %3 = tpu.matmul %1, %2, %cst {dimension_numbers = #tpu.dot_dimension_numbers<[1], [0], [0], [1], [0, 0, 1, 1], [], []>} : vector<16x1024xbf16>, vector<1024x128xbf16>, vector<16x128xf32> -> vector<16x128xf32>
    %c0_3 = arith.constant 0 : index
    %c0_4 = arith.constant 0 : index
    %4 = vector.load %arg3[%c0_3, %c0_4] : memref<1x128xf32, #tpu.memory_space<vmem>>, vector<1x128xf32>
    %5 = vector.broadcast %4 : vector<1x128xf32> to vector<16x128xf32>
    %6 = arith.addf %3, %5 : vector<16x128xf32>
    %cst_5 = arith.constant 0.000000e+00 : f32
    %7 = vector.broadcast %cst_5 : f32 to vector<16x128xf32>
    %8 = arith.maximumf %6, %7 : vector<16x128xf32>
    %c0_6 = arith.constant 0 : index
    %c0_7 = arith.constant 0 : index
    %9 = vector.load %arg4[%c0_6, %c0_7] : memref<16x128xf32, #tpu.memory_space<vmem>>, vector<16x128xf32>
    tpu.vector_store %arg4[%c0_6, %c0_7], %8 {strides = array<i32>} : memref<16x128xf32, #tpu.memory_space<vmem>>, vector<16x128xf32>,
    return
  }
  func.func @transform_0(%arg0: i32) -> (i32, i32) {
    %c0_i32 = arith.constant 0 : i32
    %c0_i32_0 = arith.constant 0 : i32
    return %arg0, %c0_i32 : i32, i32
  }
  func.func @transform_1(%arg0: i32) -> (i32, i32) {
    %c0_i32 = arith.constant 0 : i32
    %c0_i32_0 = arith.constant 0 : i32
    %c0_i32_1 = arith.constant 0 : i32
    return %c0_i32, %c0_i32_0 : i32, i32
  }
  func.func @transform_2(%arg0: i32) -> (i32, i32) {
    %c0_i32 = arith.constant 0 : i32
    %c0_i32_0 = arith.constant 0 : i32
    %c0_i32_1 = arith.constant 0 : i32
    return %c0_i32, %c0_i32_0 : i32, i32
  }
  func.func @transform_3(%arg0: i32) -> (i32, i32) {
    %c0_i32 = arith.constant 0 : i32
    %c0_i32_0 = arith.constant 0 : i32
    return %arg0, %c0_i32 : i32, i32
  }
}

module attributes {stable_mosaic.version = 11 : i64} {
  func.func @gru_step_kernel(%arg0: i32, %arg1: memref<1x2x32xf32, #tpu.memory_space<vmem>>, %arg2: memref<1x2x32xf32, #tpu.memory_space<vmem>>, %arg3: memref<1x2x32xf32, #tpu.memory_space<vmem>>, %arg4: memref<32x32xf32, #tpu.memory_space<vmem>>, %arg5: memref<32x32xf32, #tpu.memory_space<vmem>>, %arg6: memref<32x32xf32, #tpu.memory_space<vmem>>, %arg7: memref<1x32xf32, #tpu.memory_space<vmem>>, %arg8: memref<1x32xf32, #tpu.memory_space<vmem>>, %arg9: memref<1x32xf32, #tpu.memory_space<vmem>>, %arg10: memref<1x2x32xf32, #tpu.memory_space<vmem>>, %arg11: memref<2x32xf32, #tpu.memory_space<vmem>>) attributes {dimension_semantics = [#tpu.dimension_semantics<arbitrary>], iteration_bounds = array<i64: 8>, scalar_prefetch = 0 : i64, scratch_operands = 1 : i64, tpu.core_type = #tpu.core_type<tc>, window_params = [{transform_indices = @transform_0, window_bounds = array<i64: 1, 2, 32>}, {transform_indices = @transform_1, window_bounds = array<i64: 1, 2, 32>}, {transform_indices = @transform_2, window_bounds = array<i64: 1, 2, 32>}, {pipeline_mode = #tpu.pipeline_mode<synchronous>, transform_indices = @transform_3, window_bounds = array<i64: 32, 32>}, {pipeline_mode = #tpu.pipeline_mode<synchronous>, transform_indices = @transform_4, window_bounds = array<i64: 32, 32>}, {pipeline_mode = #tpu.pipeline_mode<synchronous>, transform_indices = @transform_5, window_bounds = array<i64: 32, 32>}, {pipeline_mode = #tpu.pipeline_mode<synchronous>, transform_indices = @transform_6, window_bounds = array<i64: 1, 32>}, {pipeline_mode = #tpu.pipeline_mode<synchronous>, transform_indices = @transform_7, window_bounds = array<i64: 1, 32>}, {pipeline_mode = #tpu.pipeline_mode<synchronous>, transform_indices = @transform_8, window_bounds = array<i64: 1, 32>}, {transform_indices = @transform_9, window_bounds = array<i64: 1, 2, 32>}]} {
    %c0_i32 = arith.constant 0 : i32
    %0 = arith.cmpi eq, %arg0, %c0_i32 : i32
    %1 = arith.extui %0 : i1 to i32
    %c0_i32_0 = arith.constant 0 : i32
    %2 = arith.cmpi ne, %1, %c0_i32_0 : i32
    scf.if %2 {
      %cst_33 = arith.constant 0.000000e+00 : f32
      %49 = vector.broadcast %cst_33 : f32 to vector<2x32xf32>
      %c0_34 = arith.constant 0 : index
      %c0_35 = arith.constant 0 : index
      %50 = vector.load %arg11[%c0_34, %c0_35] : memref<2x32xf32, #tpu.memory_space<vmem>>, vector<2x32xf32>
      tpu.vector_store %arg11[%c0_34, %c0_35], %49 {strides = array<i32>} : memref<2x32xf32, #tpu.memory_space<vmem>>, vector<2x32xf32>,
    } else {
    }
    %c0 = arith.constant 0 : index
    %c0_1 = arith.constant 0 : index
    %3 = vector.load %arg11[%c0, %c0_1] : memref<2x32xf32, #tpu.memory_space<vmem>>, vector<2x32xf32>
    %c0_2 = arith.constant 0 : index
    %c0_3 = arith.constant 0 : index
    %4 = vector.load %arg4[%c0_2, %c0_3] : memref<32x32xf32, #tpu.memory_space<vmem>>, vector<32x32xf32>
    %cst = arith.constant dense<0.000000e+00> : vector<2x32xf32>
    %5 = tpu.matmul %3, %4, %cst {dimension_numbers = #tpu.dot_dimension_numbers<[1], [0], [0], [1], [0, 0, 1, 1], [], []>} : vector<2x32xf32>, vector<32x32xf32>, vector<2x32xf32> -> vector<2x32xf32>
    %c0_4 = arith.constant 0 : index
    %c0_5 = arith.constant 0 : index
    %6 = vector.load %arg7[%c0_4, %c0_5] : memref<1x32xf32, #tpu.memory_space<vmem>>, vector<1x32xf32>
    %7 = vector.broadcast %6 : vector<1x32xf32> to vector<2x32xf32>
    %8 = arith.addf %5, %7 : vector<2x32xf32>
    %c0_6 = arith.constant 0 : index
    %c0_7 = arith.constant 0 : index
    %9 = vector.load %arg5[%c0_6, %c0_7] : memref<32x32xf32, #tpu.memory_space<vmem>>, vector<32x32xf32>
    %cst_8 = arith.constant dense<0.000000e+00> : vector<2x32xf32>
    %10 = tpu.matmul %3, %9, %cst_8 {dimension_numbers = #tpu.dot_dimension_numbers<[1], [0], [0], [1], [0, 0, 1, 1], [], []>} : vector<2x32xf32>, vector<32x32xf32>, vector<2x32xf32> -> vector<2x32xf32>
    %c0_9 = arith.constant 0 : index
    %c0_10 = arith.constant 0 : index
    %11 = vector.load %arg8[%c0_9, %c0_10] : memref<1x32xf32, #tpu.memory_space<vmem>>, vector<1x32xf32>
    %12 = vector.broadcast %11 : vector<1x32xf32> to vector<2x32xf32>
    %13 = arith.addf %10, %12 : vector<2x32xf32>
    %c0_11 = arith.constant 0 : index
    %c0_12 = arith.constant 0 : index
    %14 = vector.load %arg6[%c0_11, %c0_12] : memref<32x32xf32, #tpu.memory_space<vmem>>, vector<32x32xf32>
    %cst_13 = arith.constant dense<0.000000e+00> : vector<2x32xf32>
    %15 = tpu.matmul %3, %14, %cst_13 {dimension_numbers = #tpu.dot_dimension_numbers<[1], [0], [0], [1], [0, 0, 1, 1], [], []>} : vector<2x32xf32>, vector<32x32xf32>, vector<2x32xf32> -> vector<2x32xf32>
    %c0_14 = arith.constant 0 : index
    %c0_15 = arith.constant 0 : index
    %16 = vector.load %arg9[%c0_14, %c0_15] : memref<1x32xf32, #tpu.memory_space<vmem>>, vector<1x32xf32>
    %17 = vector.broadcast %16 : vector<1x32xf32> to vector<2x32xf32>
    %18 = arith.addf %15, %17 : vector<2x32xf32>
    %c0_16 = arith.constant 0 : index
    %c0_17 = arith.constant 0 : index
    %c0_18 = arith.constant 0 : index
    %19 = vector.load %arg1[%c0_16, %c0_17, %c0_18] : memref<1x2x32xf32, #tpu.memory_space<vmem>>, vector<1x2x32xf32>
    %20 = vector.shape_cast %19 : vector<1x2x32xf32> to vector<2x32xf32>
    %21 = arith.addf %20, %8 : vector<2x32xf32>
    %22 = arith.negf %21 : vector<2x32xf32>
    %23 = math.exp %22 : vector<2x32xf32>
    %cst_19 = arith.constant 1.000000e+00 : f32
    %24 = vector.broadcast %cst_19 : f32 to vector<2x32xf32>
    %25 = arith.addf %24, %23 : vector<2x32xf32>
    %26 = arith.divf %24, %25 : vector<2x32xf32>
    %c0_20 = arith.constant 0 : index
    %c0_21 = arith.constant 0 : index
    %c0_22 = arith.constant 0 : index
    %27 = vector.load %arg2[%c0_20, %c0_21, %c0_22] : memref<1x2x32xf32, #tpu.memory_space<vmem>>, vector<1x2x32xf32>
    %28 = vector.shape_cast %27 : vector<1x2x32xf32> to vector<2x32xf32>
    %29 = arith.addf %28, %13 : vector<2x32xf32>
    %30 = arith.negf %29 : vector<2x32xf32>
    %31 = math.exp %30 : vector<2x32xf32>
    %cst_23 = arith.constant 1.000000e+00 : f32
    %32 = vector.broadcast %cst_23 : f32 to vector<2x32xf32>
    %33 = arith.addf %32, %31 : vector<2x32xf32>
    %34 = arith.divf %32, %33 : vector<2x32xf32>
    %c0_24 = arith.constant 0 : index
    %c0_25 = arith.constant 0 : index
    %c0_26 = arith.constant 0 : index
    %35 = vector.load %arg3[%c0_24, %c0_25, %c0_26] : memref<1x2x32xf32, #tpu.memory_space<vmem>>, vector<1x2x32xf32>
    %36 = vector.shape_cast %35 : vector<1x2x32xf32> to vector<2x32xf32>
    %37 = arith.mulf %26, %18 : vector<2x32xf32>
    %38 = arith.addf %36, %37 : vector<2x32xf32>
    %39 = math.tanh %38 : vector<2x32xf32>
    %cst_27 = arith.constant 1.000000e+00 : f32
    %40 = vector.broadcast %cst_27 : f32 to vector<2x32xf32>
    %41 = arith.subf %40, %34 : vector<2x32xf32>
    %42 = arith.mulf %41, %39 : vector<2x32xf32>
    %43 = arith.mulf %34, %3 : vector<2x32xf32>
    %44 = arith.addf %42, %43 : vector<2x32xf32>
    %c0_28 = arith.constant 0 : index
    %c0_29 = arith.constant 0 : index
    %45 = vector.load %arg11[%c0_28, %c0_29] : memref<2x32xf32, #tpu.memory_space<vmem>>, vector<2x32xf32>
    tpu.vector_store %arg11[%c0_28, %c0_29], %44 {strides = array<i32>} : memref<2x32xf32, #tpu.memory_space<vmem>>, vector<2x32xf32>,
    %c0_30 = arith.constant 0 : index
    %c0_31 = arith.constant 0 : index
    %c0_32 = arith.constant 0 : index
    %46 = vector.load %arg10[%c0_30, %c0_31, %c0_32] : memref<1x2x32xf32, #tpu.memory_space<vmem>>, vector<1x2x32xf32>
    %47 = vector.shape_cast %46 : vector<1x2x32xf32> to vector<2x32xf32>
    %48 = vector.shape_cast %44 : vector<2x32xf32> to vector<1x2x32xf32>
    tpu.vector_store %arg10[%c0_30, %c0_31, %c0_32], %48 {strides = array<i32>} : memref<1x2x32xf32, #tpu.memory_space<vmem>>, vector<1x2x32xf32>,
    return
  }
  func.func @transform_0(%arg0: i32) -> (i32, i32, i32) {
    %c0_i32 = arith.constant 0 : i32
    %c0_i32_0 = arith.constant 0 : i32
    %c0_i32_1 = arith.constant 0 : i32
    return %arg0, %c0_i32, %c0_i32_0 : i32, i32, i32
  }
  func.func @transform_1(%arg0: i32) -> (i32, i32, i32) {
    %c0_i32 = arith.constant 0 : i32
    %c0_i32_0 = arith.constant 0 : i32
    %c0_i32_1 = arith.constant 0 : i32
    return %arg0, %c0_i32, %c0_i32_0 : i32, i32, i32
  }
  func.func @transform_2(%arg0: i32) -> (i32, i32, i32) {
    %c0_i32 = arith.constant 0 : i32
    %c0_i32_0 = arith.constant 0 : i32
    %c0_i32_1 = arith.constant 0 : i32
    return %arg0, %c0_i32, %c0_i32_0 : i32, i32, i32
  }
  func.func @transform_3(%arg0: i32) -> (i32, i32) {
    %c0_i32 = arith.constant 0 : i32
    %c0_i32_0 = arith.constant 0 : i32
    %c0_i32_1 = arith.constant 0 : i32
    return %c0_i32, %c0_i32_0 : i32, i32
  }
  func.func @transform_4(%arg0: i32) -> (i32, i32) {
    %c0_i32 = arith.constant 0 : i32
    %c0_i32_0 = arith.constant 0 : i32
    %c0_i32_1 = arith.constant 0 : i32
    return %c0_i32, %c0_i32_0 : i32, i32
  }
  func.func @transform_5(%arg0: i32) -> (i32, i32) {
    %c0_i32 = arith.constant 0 : i32
    %c0_i32_0 = arith.constant 0 : i32
    %c0_i32_1 = arith.constant 0 : i32
    return %c0_i32, %c0_i32_0 : i32, i32
  }
  func.func @transform_6(%arg0: i32) -> (i32, i32) {
    %c0_i32 = arith.constant 0 : i32
    %c0_i32_0 = arith.constant 0 : i32
    %c0_i32_1 = arith.constant 0 : i32
    return %c0_i32, %c0_i32_0 : i32, i32
  }
  func.func @transform_7(%arg0: i32) -> (i32, i32) {
    %c0_i32 = arith.constant 0 : i32
    %c0_i32_0 = arith.constant 0 : i32
    %c0_i32_1 = arith.constant 0 : i32
    return %c0_i32, %c0_i32_0 : i32, i32
  }
  func.func @transform_8(%arg0: i32) -> (i32, i32) {
    %c0_i32 = arith.constant 0 : i32
    %c0_i32_0 = arith.constant 0 : i32
    %c0_i32_1 = arith.constant 0 : i32
    return %c0_i32, %c0_i32_0 : i32, i32
  }
  func.func @transform_9(%arg0: i32) -> (i32, i32, i32) {
    %c0_i32 = arith.constant 0 : i32
    %c0_i32_0 = arith.constant 0 : i32
    %c0_i32_1 = arith.constant 0 : i32
    return %arg0, %c0_i32, %c0_i32_0 : i32, i32, i32
  }
}

module attributes {stable_mosaic.version = 11 : i64} {
  func.func @head_kernel(%arg0: memref<16x32xf32, #tpu.memory_space<vmem>>, %arg1: memref<16x32xf32, #tpu.memory_space<vmem>>, %arg2: memref<32x128xf32, #tpu.memory_space<vmem>>, %arg3: memref<32x128xf32, #tpu.memory_space<vmem>>, %arg4: memref<1x128xf32, #tpu.memory_space<vmem>>, %arg5: memref<1x128xf32, #tpu.memory_space<vmem>>, %arg6: memref<1x128xf32, #tpu.memory_space<vmem>>, %arg7: memref<128x128xf32, #tpu.memory_space<vmem>>, %arg8: memref<1x128xf32, #tpu.memory_space<vmem>>, %arg9: memref<16x128xf32, #tpu.memory_space<vmem>>) attributes {dimension_semantics = [], scalar_prefetch = 0 : i64, scratch_operands = 0 : i64, tpu.core_type = #tpu.core_type<tc>} {
    %c0 = arith.constant 0 : index
    %c0_0 = arith.constant 0 : index
    %0 = vector.load %arg0[%c0, %c0_0] : memref<16x32xf32, #tpu.memory_space<vmem>>, vector<16x32xf32>
    %1 = arith.truncf %0 : vector<16x32xf32> to vector<16x32xbf16>
    %c0_1 = arith.constant 0 : index
    %c0_2 = arith.constant 0 : index
    %2 = vector.load %arg1[%c0_1, %c0_2] : memref<16x32xf32, #tpu.memory_space<vmem>>, vector<16x32xf32>
    %3 = arith.truncf %2 : vector<16x32xf32> to vector<16x32xbf16>
    %c0_3 = arith.constant 0 : index
    %c0_4 = arith.constant 0 : index
    %4 = vector.load %arg2[%c0_3, %c0_4] : memref<32x128xf32, #tpu.memory_space<vmem>>, vector<32x128xf32>
    %5 = arith.truncf %4 : vector<32x128xf32> to vector<32x128xbf16>
    %cst = arith.constant dense<0.000000e+00> : vector<16x128xf32>
    %6 = tpu.matmul %1, %5, %cst {dimension_numbers = #tpu.dot_dimension_numbers<[1], [0], [0], [1], [0, 0, 1, 1], [], []>} : vector<16x32xbf16>, vector<32x128xbf16>, vector<16x128xf32> -> vector<16x128xf32>
    %c0_5 = arith.constant 0 : index
    %c0_6 = arith.constant 0 : index
    %7 = vector.load %arg3[%c0_5, %c0_6] : memref<32x128xf32, #tpu.memory_space<vmem>>, vector<32x128xf32>
    %8 = arith.truncf %7 : vector<32x128xf32> to vector<32x128xbf16>
    %cst_7 = arith.constant dense<0.000000e+00> : vector<16x128xf32>
    %9 = tpu.matmul %3, %8, %cst_7 {dimension_numbers = #tpu.dot_dimension_numbers<[1], [0], [0], [1], [0, 0, 1, 1], [], []>} : vector<16x32xbf16>, vector<32x128xbf16>, vector<16x128xf32> -> vector<16x128xf32>
    %10 = arith.addf %6, %9 : vector<16x128xf32>
    %c0_8 = arith.constant 0 : index
    %c0_9 = arith.constant 0 : index
    %11 = vector.load %arg4[%c0_8, %c0_9] : memref<1x128xf32, #tpu.memory_space<vmem>>, vector<1x128xf32>
    %12 = vector.broadcast %11 : vector<1x128xf32> to vector<16x128xf32>
    %13 = arith.addf %10, %12 : vector<16x128xf32>
    %cst_10 = arith.constant dense<0.000000e+00> : vector<128xf32>
    %14 = vector.multi_reduction <add>, %13, %cst_10 [0] : vector<16x128xf32> to vector<128xf32>
    %15 = vector.shape_cast %14 : vector<128xf32> to vector<1x128xf32>
    %cst_11 = arith.constant 6.250000e-02 : f32
    %16 = vector.broadcast %cst_11 : f32 to vector<1x128xf32>
    %17 = arith.mulf %15, %16 : vector<1x128xf32>
    %18 = vector.broadcast %17 : vector<1x128xf32> to vector<16x128xf32>
    %19 = arith.subf %13, %18 : vector<16x128xf32>
    %20 = arith.mulf %19, %19 : vector<16x128xf32>
    %cst_12 = arith.constant dense<0.000000e+00> : vector<128xf32>
    %21 = vector.multi_reduction <add>, %20, %cst_12 [0] : vector<16x128xf32> to vector<128xf32>
    %22 = vector.shape_cast %21 : vector<128xf32> to vector<1x128xf32>
    %cst_13 = arith.constant 6.250000e-02 : f32
    %23 = vector.broadcast %cst_13 : f32 to vector<1x128xf32>
    %24 = arith.mulf %22, %23 : vector<1x128xf32>
    %cst_14 = arith.constant 9.99999974E-6 : f32
    %25 = vector.broadcast %cst_14 : f32 to vector<1x128xf32>
    %26 = arith.addf %24, %25 : vector<1x128xf32>
    %27 = math.rsqrt %26 : vector<1x128xf32>
    %c0_15 = arith.constant 0 : index
    %c0_16 = arith.constant 0 : index
    %28 = vector.load %arg5[%c0_15, %c0_16] : memref<1x128xf32, #tpu.memory_space<vmem>>, vector<1x128xf32>
    %29 = arith.mulf %27, %28 : vector<1x128xf32>
    %30 = vector.broadcast %29 : vector<1x128xf32> to vector<16x128xf32>
    %31 = arith.mulf %19, %30 : vector<16x128xf32>
    %c0_17 = arith.constant 0 : index
    %c0_18 = arith.constant 0 : index
    %32 = vector.load %arg6[%c0_17, %c0_18] : memref<1x128xf32, #tpu.memory_space<vmem>>, vector<1x128xf32>
    %33 = vector.broadcast %32 : vector<1x128xf32> to vector<16x128xf32>
    %34 = arith.addf %31, %33 : vector<16x128xf32>
    %cst_19 = arith.constant 0.000000e+00 : f32
    %35 = vector.broadcast %cst_19 : f32 to vector<16x128xf32>
    %36 = arith.maximumf %34, %35 : vector<16x128xf32>
    %37 = arith.truncf %36 : vector<16x128xf32> to vector<16x128xbf16>
    %c0_20 = arith.constant 0 : index
    %c0_21 = arith.constant 0 : index
    %38 = vector.load %arg7[%c0_20, %c0_21] : memref<128x128xf32, #tpu.memory_space<vmem>>, vector<128x128xf32>
    %39 = arith.truncf %38 : vector<128x128xf32> to vector<128x128xbf16>
    %cst_22 = arith.constant dense<0.000000e+00> : vector<16x128xf32>
    %40 = tpu.matmul %37, %39, %cst_22 {dimension_numbers = #tpu.dot_dimension_numbers<[1], [0], [0], [1], [0, 0, 1, 1], [], []>} : vector<16x128xbf16>, vector<128x128xbf16>, vector<16x128xf32> -> vector<16x128xf32>
    %c0_23 = arith.constant 0 : index
    %c0_24 = arith.constant 0 : index
    %41 = vector.load %arg8[%c0_23, %c0_24] : memref<1x128xf32, #tpu.memory_space<vmem>>, vector<1x128xf32>
    %42 = vector.broadcast %41 : vector<1x128xf32> to vector<16x128xf32>
    %43 = arith.addf %40, %42 : vector<16x128xf32>
    %c0_25 = arith.constant 0 : index
    %c0_26 = arith.constant 0 : index
    %44 = vector.load %arg9[%c0_25, %c0_26] : memref<16x128xf32, #tpu.memory_space<vmem>>, vector<16x128xf32>
    tpu.vector_store %arg9[%c0_25, %c0_26], %43 {strides = array<i32>} : memref<16x128xf32, #tpu.memory_space<vmem>>, vector<16x128xf32>,
    return
  }
}

</mosaic_0001>

<llo_original>
// kernel: cpc_multitemporal_classifier_forward.4
$region0: #{cpc_multitemporal_classifier_forward.4}
  #allocation0 [shape = 'u32[]', space=smem, size = 0x4, offset = 0x4, fixed_abs, tag = 'smem constant byte address 0x4 - core index']
  #allocation1 [shape = 'u32[72,128]{1,0:T(1,128)}', space=vmem, size = 0x9000, scoped, tag = 'internal scratch']
  #allocation2 [shape = 'f32[2,32]{1,0:T(2,128)}', space=vmem, size = 0x400, scoped, tag = 'scratch operand']
  %s0 = inlined_call_operand.vmem [shape: f32[8,2,32], index: 0, kind: input, shape index: {}]
  %s1 = inlined_call_operand.vmem [shape: f32[8,2,32], index: 1, kind: input, shape index: {}]
  %s2 = inlined_call_operand.vmem [shape: f32[8,2,32], index: 2, kind: input, shape index: {}]
  %s3 = inlined_call_operand.vmem [shape: f32[32,32], index: 3, kind: input, shape index: {}]
  %s4 = inlined_call_operand.vmem [shape: f32[32,32], index: 4, kind: input, shape index: {}]
  %s5 = inlined_call_operand.vmem [shape: f32[32,32], index: 5, kind: input, shape index: {}]
  %s6 = inlined_call_operand.vmem [shape: f32[1,32], index: 6, kind: input, shape index: {}]
  %s7 = inlined_call_operand.vmem [shape: f32[1,32], index: 7, kind: input, shape index: {}]
  %s8 = inlined_call_operand.vmem [shape: f32[1,32], index: 8, kind: input, shape index: {}]
  %s9 = inlined_call_operand.vmem [shape: f32[8,2,32], index: 9, kind: output, shape index: {}]
  %s10 = sld [smem:[#allocation0]]
  $region73: #{cpc_multitemporal_classifier_forward.4} parent=0
    _
  %s12 = ssub.s32 1, %s10
  %s13 = scalar_select 0, %s12, %s10
  loop: start=0, step=1, limit=10
  $region2: #{cpc_multitemporal_classifier_forward.4} parent=0 // loop_pre_header
    _
  $region3: #{cpc_multitemporal_classifier_forward.4} parent=0 // loop_header
    %s15 = sphi 0, %s19
    %p16 = scmp.ge.s32.totalorder %s15, 10
    %s25 = sphi 0, %s27
    %s28 = sphi 0, %s25
    %s29 = sphi 0, %s28
    %s45 = sphi 0, %s29
    %s51 = sphi 0, %s53
    %s54 = sphi 0, %s51
    %s55 = sphi 0, %s54
    %s71 = sphi 0, %s55
    %s77 = sphi 0, %s79
    %s80 = sphi 0, %s77
    %s81 = sphi 0, %s80
    %s97 = sphi 0, %s81
    %s101 = sphi 0, %s101
    %s103 = sphi 0, %s101
    %s104 = sphi 0, %s103
    %s118 = sphi 0, %s104
    %s122 = sphi 0, %s122
    %s124 = sphi 0, %s122
    %s125 = sphi 0, %s124
    %s139 = sphi 0, %s125
    %s143 = sphi 0, %s143
    %s145 = sphi 0, %s143
    %s146 = sphi 0, %s145
    %s160 = sphi 0, %s146
    %s164 = sphi 0, %s164
    %s166 = sphi 0, %s164
    %s167 = sphi 0, %s166
    %s181 = sphi 0, %s167
    %s185 = sphi 0, %s185
    %s187 = sphi 0, %s185
    %s188 = sphi 0, %s187
    %s202 = sphi 0, %s188
    %s206 = sphi 0, %s206
    %s208 = sphi 0, %s206
    %s209 = sphi 0, %s208
    %s223 = sphi 0, %s209
    %s229 = sphi 0, %s231
    %s232 = sphi 0, %s229
    %s233 = sphi 0, %s232
    %s249 = sphi 0, %s233
  $region4: #{cpc_multitemporal_classifier_forward.4} parent=0 // loop_header_branch
    %18 = sbr.rel (%p16) target = $region8
  $region5: #{cpc_multitemporal_classifier_forward.4} parent=0 // loop_body
    %s20 = ssub.s32 %s15, 1
    %s21 = ssub.s32 %s15, 2
    %s22 = sadd.s32 %s15, 1
    %s23 = ssub.s32 %s15, %s22
    %p24 = scmp.eq.s32.totalorder %s23, 0
    %s26 = sadd.s32 %s25, 1
    %s27 = scalar_select %p24, %s25, %s26
    %p30 = pneg %p24
    %p31 = scmp.eq.s32.totalorder %s15, 7
    %p32 = por %p30, %p31
    %p33 = scmp.ne.s32.totalorder %s25, %s28
    %p34 = scmp.eq.s32.totalorder %s15, 0
    %p35 = por %p33, %p34
    %p36 = scmp.ne.s32.totalorder %s25, %s28
    %p37 = scmp.eq.s32.totalorder %s20, 7
    %p38 = por %p36, %p37
    %p39 = scmp.ne.s32.totalorder %s28, %s29
    %p40 = scmp.eq.s32.totalorder %s20, 0
    %p41 = por %p39, %p40
    %p42 = scmp.ne.s32.totalorder %s28, %s29
    %p43 = scmp.eq.s32.totalorder %s21, 7
    %p44 = por %p42, %p43
    %p46 = scmp.ne.s32.totalorder %s29, %s45
    %p47 = scmp.eq.s32.totalorder %s21, 0
    %p48 = por %p46, %p47
    %s49 = ssub.s32 %s15, %s22
    %p50 = scmp.eq.s32.totalorder %s49, 0
    %s52 = sadd.s32 %s51, 1
    %s53 = scalar_select %p50, %s51, %s52
    %p56 = pneg %p50
    %p57 = scmp.eq.s32.totalorder %s15, 7
    %p58 = por %p56, %p57
    %p59 = scmp.ne.s32.totalorder %s51, %s54
    %p60 = scmp.eq.s32.totalorder %s15, 0
    %p61 = por %p59, %p60
    %p62 = scmp.ne.s32.totalorder %s51, %s54
    %p63 = scmp.eq.s32.totalorder %s20, 7
    %p64 = por %p62, %p63
    %p65 = scmp.ne.s32.totalorder %s54, %s55
    %p66 = scmp.eq.s32.totalorder %s20, 0
    %p67 = por %p65, %p66
    %p68 = scmp.ne.s32.totalorder %s54, %s55
    %p69 = scmp.eq.s32.totalorder %s21, 7
    %p70 = por %p68, %p69
    %p72 = scmp.ne.s32.totalorder %s55, %s71
    %p73 = scmp.eq.s32.totalorder %s21, 0
    %p74 = por %p72, %p73
    %s75 = ssub.s32 %s15, %s22
    %p76 = scmp.eq.s32.totalorder %s75, 0
    %s78 = sadd.s32 %s77, 1
    %s79 = scalar_select %p76, %s77, %s78
    %p82 = pneg %p76
    %p83 = scmp.eq.s32.totalorder %s15, 7
    %p84 = por %p82, %p83
    %p85 = scmp.ne.s32.totalorder %s77, %s80
    %p86 = scmp.eq.s32.totalorder %s15, 0
    %p87 = por %p85, %p86
    %p88 = scmp.ne.s32.totalorder %s77, %s80
    %p89 = scmp.eq.s32.totalorder %s20, 7
    %p90 = por %p88, %p89
    %p91 = scmp.ne.s32.totalorder %s80, %s81
    %p92 = scmp.eq.s32.totalorder %s20, 0
    %p93 = por %p91, %p92
    %p94 = scmp.ne.s32.totalorder %s80, %s81
    %p95 = scmp.eq.s32.totalorder %s21, 7
    %p96 = por %p94, %p95
    %p98 = scmp.ne.s32.totalorder %s81, %s97
    %p99 = scmp.eq.s32.totalorder %s21, 0
    %p100 = por %p98, %p99
    %s102 = sadd.s32 %s101, 1
    %p105 = scmp.eq.s32.totalorder %s15, 7
    %p106 = scmp.ne.s32.totalorder %s101, %s103
    %p107 = scmp.eq.s32.totalorder %s15, 0
    %p108 = por %p106, %p107
    %p109 = scmp.ne.s32.totalorder %s101, %s103
    %p110 = scmp.eq.s32.totalorder %s20, 7
    %p111 = por %p109, %p110
    %p112 = scmp.ne.s32.totalorder %s103, %s104
    %p113 = scmp.eq.s32.totalorder %s20, 0
    %p114 = por %p112, %p113
    %p115 = scmp.ne.s32.totalorder %s103, %s104
    %p116 = scmp.eq.s32.totalorder %s21, 7
    %p117 = por %p115, %p116
    %p119 = scmp.ne.s32.totalorder %s104, %s118
    %p120 = scmp.eq.s32.totalorder %s21, 0
    %p121 = por %p119, %p120
    %s123 = sadd.s32 %s122, 1
    %p126 = scmp.eq.s32.totalorder %s15, 7
    %p127 = scmp.ne.s32.totalorder %s122, %s124
    %p128 = scmp.eq.s32.totalorder %s15, 0
    %p129 = por %p127, %p128
    %p130 = scmp.ne.s32.totalorder %s122, %s124
    %p131 = scmp.eq.s32.totalorder %s20, 7
    %p132 = por %p130, %p131
    %p133 = scmp.ne.s32.totalorder %s124, %s125
    %p134 = scmp.eq.s32.totalorder %s20, 0
    %p135 = por %p133, %p134
    %p136 = scmp.ne.s32.totalorder %s124, %s125
    %p137 = scmp.eq.s32.totalorder %s21, 7
    %p138 = por %p136, %p137
    %p140 = scmp.ne.s32.totalorder %s125, %s139
    %p141 = scmp.eq.s32.totalorder %s21, 0
    %p142 = por %p140, %p141
    %s144 = sadd.s32 %s143, 1
    %p147 = scmp.eq.s32.totalorder %s15, 7
    %p148 = scmp.ne.s32.totalorder %s143, %s145
    %p149 = scmp.eq.s32.totalorder %s15, 0
    %p150 = por %p148, %p149
    %p151 = scmp.ne.s32.totalorder %s143, %s145
    %p152 = scmp.eq.s32.totalorder %s20, 7
    %p153 = por %p151, %p152
    %p154 = scmp.ne.s32.totalorder %s145, %s146
    %p155 = scmp.eq.s32.totalorder %s20, 0
    %p156 = por %p154, %p155
    %p157 = scmp.ne.s32.totalorder %s145, %s146
    %p158 = scmp.eq.s32.totalorder %s21, 7
    %p159 = por %p157, %p158
    %p161 = scmp.ne.s32.totalorder %s146, %s160
    %p162 = scmp.eq.s32.totalorder %s21, 0
    %p163 = por %p161, %p162
    %s165 = sadd.s32 %s164, 1
    %p168 = scmp.eq.s32.totalorder %s15, 7
    %p169 = scmp.ne.s32.totalorder %s164, %s166
    %p170 = scmp.eq.s32.totalorder %s15, 0
    %p171 = por %p169, %p170
    %p172 = scmp.ne.s32.totalorder %s164, %s166
    %p173 = scmp.eq.s32.totalorder %s20, 7
    %p174 = por %p172, %p173
    %p175 = scmp.ne.s32.totalorder %s166, %s167
    %p176 = scmp.eq.s32.totalorder %s20, 0
    %p177 = por %p175, %p176
    %p178 = scmp.ne.s32.totalorder %s166, %s167
    %p179 = scmp.eq.s32.totalorder %s21, 7
    %p180 = por %p178, %p179
    %p182 = scmp.ne.s32.totalorder %s167, %s181
    %p183 = scmp.eq.s32.totalorder %s21, 0
    %p184 = por %p182, %p183
    %s186 = sadd.s32 %s185, 1
    %p189 = scmp.eq.s32.totalorder %s15, 7
    %p190 = scmp.ne.s32.totalorder %s185, %s187
    %p191 = scmp.eq.s32.totalorder %s15, 0
    %p192 = por %p190, %p191
    %p193 = scmp.ne.s32.totalorder %s185, %s187
    %p194 = scmp.eq.s32.totalorder %s20, 7
    %p195 = por %p193, %p194
    %p196 = scmp.ne.s32.totalorder %s187, %s188
    %p197 = scmp.eq.s32.totalorder %s20, 0
    %p198 = por %p196, %p197
    %p199 = scmp.ne.s32.totalorder %s187, %s188
    %p200 = scmp.eq.s32.totalorder %s21, 7
    %p201 = por %p199, %p200
    %p203 = scmp.ne.s32.totalorder %s188, %s202
    %p204 = scmp.eq.s32.totalorder %s21, 0
    %p205 = por %p203, %p204
    %s207 = sadd.s32 %s206, 1
    %p210 = scmp.eq.s32.totalorder %s15, 7
    %p211 = scmp.ne.s32.totalorder %s206, %s208
    %p212 = scmp.eq.s32.totalorder %s15, 0
    %p213 = por %p211, %p212
    %p214 = scmp.ne.s32.totalorder %s206, %s208
    %p215 = scmp.eq.s32.totalorder %s20, 7
    %p216 = por %p214, %p215
    %p217 = scmp.ne.s32.totalorder %s208, %s209
    %p218 = scmp.eq.s32.totalorder %s20, 0
    %p219 = por %p217, %p218
    %p220 = scmp.ne.s32.totalorder %s208, %s209
    %p221 = scmp.eq.s32.totalorder %s21, 7
    %p222 = por %p220, %p221
    %p224 = scmp.ne.s32.totalorder %s209, %s223
    %p225 = scmp.eq.s32.totalorder %s21, 0
    %p226 = por %p224, %p225
    %s227 = ssub.s32 %s15, %s22
    %p228 = scmp.eq.s32.totalorder %s227, 0
    %s230 = sadd.s32 %s229, 1
    %s231 = scalar_select %p228, %s229, %s230
    %p234 = pneg %p228
    %p235 = scmp.eq.s32.totalorder %s15, 7
    %p236 = por %p234, %p235
    %p237 = scmp.ne.s32.totalorder %s229, %s232
    %p238 = scmp.eq.s32.totalorder %s15, 0
    %p239 = por %p237, %p238
    %p240 = scmp.ne.s32.totalorder %s229, %s232
    %p241 = scmp.eq.s32.totalorder %s20, 7
    %p242 = por %p240, %p241
    %p243 = scmp.ne.s32.totalorder %s232, %s233
    %p244 = scmp.eq.s32.totalorder %s20, 0
    %p245 = por %p243, %p244
    %p246 = scmp.ne.s32.totalorder %s232, %s233
    %p247 = scmp.eq.s32.totalorder %s21, 7
    %p248 = por %p246, %p247
    %p250 = scmp.ne.s32.totalorder %s233, %s249
    %p251 = scmp.eq.s32.totalorder %s21, 0
    %p252 = por %p250, %p251
    %p253 = scmp.le.s32.totalorder 1, %s15
    %p254 = scmp.lt.s32.totalorder %s15, 9
    %p255 = pnand %p253, %p254
    %p256 = pneg %p255
    // Predicated region
    $region9: #{cpc_multitemporal_classifier_forward.4} parent=5 // pred_check
      _
    $region10: #{cpc_multitemporal_classifier_forward.4} parent=5 // pred_check_branch
      %258 = sbr.rel (%p255) target = $region12
    $region11: #{cpc_multitemporal_classifier_forward.4} parent=5 // pred_region
      %s259 = ssub.s32 %s15, 1
      // Predicated region
      $region13: #{cpc_multitemporal_classifier_forward.4} parent=11 // pred_check
        %p260 = pneg %p114
      $region14: #{cpc_multitemporal_classifier_forward.4} parent=11 // pred_check_branch
        %262 = sbr.rel (%p260) target = $region16
      $region15: #{cpc_multitemporal_classifier_forward.4} parent=11 // pred_region
        _
      $region16: #{cpc_multitemporal_classifier_forward.4} parent=11 // pred_fallthru
        _
      // Predicated region
      $region17: #{cpc_multitemporal_classifier_forward.4} parent=11 // pred_check
        %p263 = pneg %p135
      $region18: #{cpc_multitemporal_classifier_forward.4} parent=11 // pred_check_branch
        %265 = sbr.rel (%p263) target = $region20
      $region19: #{cpc_multitemporal_classifier_forward.4} parent=11 // pred_region
        _
      $region20: #{cpc_multitemporal_classifier_forward.4} parent=11 // pred_fallthru
        _
      // Predicated region
      $region21: #{cpc_multitemporal_classifier_forward.4} parent=11 // pred_check
        %p266 = pneg %p156
      $region22: #{cpc_multitemporal_classifier_forward.4} parent=11 // pred_check_branch
        %268 = sbr.rel (%p266) target = $region24
      $region23: #{cpc_multitemporal_classifier_forward.4} parent=11 // pred_region
        _
      $region24: #{cpc_multitemporal_classifier_forward.4} parent=11 // pred_fallthru
        _
      // Predicated region
      $region25: #{cpc_multitemporal_classifier_forward.4} parent=11 // pred_check
        %p269 = pneg %p177
      $region26: #{cpc_multitemporal_classifier_forward.4} parent=11 // pred_check_branch
        %271 = sbr.rel (%p269) target = $region28
      $region27: #{cpc_multitemporal_classifier_forward.4} parent=11 // pred_region
        _
      $region28: #{cpc_multitemporal_classifier_forward.4} parent=11 // pred_fallthru
        _
      // Predicated region
      $region29: #{cpc_multitemporal_classifier_forward.4} parent=11 // pred_check
        %p272 = pneg %p198
      $region30: #{cpc_multitemporal_classifier_forward.4} parent=11 // pred_check_branch
        %274 = sbr.rel (%p272) target = $region32
      $region31: #{cpc_multitemporal_classifier_forward.4} parent=11 // pred_region
        _
      $region32: #{cpc_multitemporal_classifier_forward.4} parent=11 // pred_fallthru
        _
      // Predicated region
      $region33: #{cpc_multitemporal_classifier_forward.4} parent=11 // pred_check
        %p275 = pneg %p219
      $region34: #{cpc_multitemporal_classifier_forward.4} parent=11 // pred_check_branch
        %277 = sbr.rel (%p275) target = $region36
      $region35: #{cpc_multitemporal_classifier_forward.4} parent=11 // pred_region
        _
      $region36: #{cpc_multitemporal_classifier_forward.4} parent=11 // pred_fallthru
        _
    $region12: #{cpc_multitemporal_classifier_forward.4} parent=5 // pred_fallthru
      _
    %p278 = scmp.lt.s32.totalorder %s15, 8
    // Predicated region
    $region37: #{cpc_multitemporal_classifier_forward.4} parent=5 // pred_check
      %p279 = pneg %p278
    $region38: #{cpc_multitemporal_classifier_forward.4} parent=5 // pred_check_branch
      %281 = sbr.rel (%p279) target = $region40
    $region39: #{cpc_multitemporal_classifier_forward.4} parent=5 // pred_region
      // Predicated region
      $region41: #{cpc_multitemporal_classifier_forward.4} parent=39 // pred_check
        %p282 = pneg %p35
      $region42: #{cpc_multitemporal_classifier_forward.4} parent=39 // pred_check_branch
        %284 = sbr.rel (%p282) target = $region44
      $region43: #{cpc_multitemporal_classifier_forward.4} parent=39 // pred_region
        %p285 = scmp.lt.s32.totalorder %s15, 7
        %s286 = scalar_select %p285, %s15, 7
        %s287 = smul.addr %s286, 2
        %s288 = scalar_lea.vmem %s0, %s287
      $region44: #{cpc_multitemporal_classifier_forward.4} parent=39 // pred_fallthru
        _
      // Predicated region
      $region45: #{cpc_multitemporal_classifier_forward.4} parent=39 // pred_check
        %p289 = pneg %p61
      $region46: #{cpc_multitemporal_classifier_forward.4} parent=39 // pred_check_branch
        %291 = sbr.rel (%p289) target = $region48
      $region47: #{cpc_multitemporal_classifier_forward.4} parent=39 // pred_region
        %p292 = scmp.lt.s32.totalorder %s15, 7
        %s293 = scalar_select %p292, %s15, 7
        %s294 = smul.addr %s293, 2
        %s295 = scalar_lea.vmem %s1, %s294
      $region48: #{cpc_multitemporal_classifier_forward.4} parent=39 // pred_fallthru
        _
      // Predicated region
      $region49: #{cpc_multitemporal_classifier_forward.4} parent=39 // pred_check
        %p296 = pneg %p87
      $region50: #{cpc_multitemporal_classifier_forward.4} parent=39 // pred_check_branch
        %298 = sbr.rel (%p296) target = $region52
      $region51: #{cpc_multitemporal_classifier_forward.4} parent=39 // pred_region
        %p299 = scmp.lt.s32.totalorder %s15, 7
        %s300 = scalar_select %p299, %s15, 7
        %s301 = smul.addr %s300, 2
        %s302 = scalar_lea.vmem %s2, %s301
      $region52: #{cpc_multitemporal_classifier_forward.4} parent=39 // pred_fallthru
        _
    $region40: #{cpc_multitemporal_classifier_forward.4} parent=5 // pred_fallthru
      _
    %p303 = scmp.le.s32.totalorder 1, %s15
    %p304 = scmp.lt.s32.totalorder %s15, 9
    %p305 = pnand %p303, %p304
    %p306 = pneg %p305
    // Predicated region
    $region53: #{cpc_multitemporal_classifier_forward.4} parent=5 // pred_check
      _
    $region54: #{cpc_multitemporal_classifier_forward.4} parent=5 // pred_check_branch
      %308 = sbr.rel (%p305) target = $region56
    $region55: #{cpc_multitemporal_classifier_forward.4} parent=5 // pred_region
      %s309 = ssub.s32 %s15, 1
      %p310 = scmp.lt.s32.totalorder %s20, 7
      %s311 = scalar_select %p310, %s20, 7
      %s312 = smul.addr %s311, 2
      %s313 = scalar_lea.vmem %s0, %s312
      %p314 = pneg %p41
      %p315 = pneg %p38
      %p316 = scmp.lt.s32.totalorder %s20, 7
      %s317 = scalar_select %p316, %s20, 7
      %s318 = smul.addr %s317, 2
      %s319 = scalar_lea.vmem %s1, %s318
      %p320 = pneg %p67
      %p321 = pneg %p64
      %p322 = scmp.lt.s32.totalorder %s20, 7
      %s323 = scalar_select %p322, %s20, 7
      %s324 = smul.addr %s323, 2
      %s325 = scalar_lea.vmem %s2, %s324
      %p326 = pneg %p93
      %p327 = pneg %p90
      %p328 = pneg %p114
      %p329 = pneg %p111
      %p330 = pneg %p135
      %p331 = pneg %p132
      %p332 = pneg %p156
      %p333 = pneg %p153
      %p334 = pneg %p177
      %p335 = pneg %p174
      %p336 = pneg %p198
      %p337 = pneg %p195
      %p338 = pneg %p219
      %p339 = pneg %p216
      %p340 = pneg %p245
      %p341 = pneg %p242
      %p342 = scmp.lt.s32.totalorder %s20, 7
      %s343 = scalar_select %p342, %s20, 7
      %s344 = smul.addr %s343, 2
      %s345 = scalar_lea.vmem %s9, %s344
      %p346 = scmp.lt.s32.totalorder %s20, 7
      %s347 = scalar_select %p346, %s20, 7
      %s348 = smul.addr %s347, 2
      %s349 = scalar_lea.vmem %s0, %s348
      %p350 = scmp.lt.s32.totalorder %s20, 7
      %s351 = scalar_select %p350, %s20, 7
      %s352 = smul.addr %s351, 2
      %s353 = scalar_lea.vmem %s1, %s352
      %p354 = scmp.lt.s32.totalorder %s20, 7
      %s355 = scalar_select %p354, %s20, 7
      %s356 = smul.addr %s355, 2
      %s357 = scalar_lea.vmem %s2, %s356
      %p358 = scmp.lt.s32.totalorder %s20, 7
      %s359 = scalar_select %p358, %s20, 7
      %s360 = smul.addr %s359, 2
      %s361 = scalar_lea.vmem %s9, %s360
      %p362 = scmp.eq.s32.totalorder %s20, 0
      // Predicated region
      $region57: #{cpc_multitemporal_classifier_forward.4} parent=55 // pred_check
        %p363 = pneg %p362
      $region58: #{cpc_multitemporal_classifier_forward.4} parent=55 // pred_check_branch
        %365 = sbr.rel (%p363) target = $region60
      $region59: #{cpc_multitemporal_classifier_forward.4} parent=55 // pred_region
        %vm366 = vcmask 254976
        %367 = vst.msk [vmem:[#allocation2] sm:$0x3] %vm366, 0.0
      $region60: #{cpc_multitemporal_classifier_forward.4} parent=55 // pred_fallthru
        _
      %v368 = vld [vmem:[#allocation2] sm:$0x3]
      %v369 = vld [vmem:[%s3] sm:$0xff]
      %v370 = vld [vmem:[%s3 + $0x8] sm:$0xff]
      %v371 = vld [vmem:[%s3 + $0x10] sm:$0xff]
      %v372 = vld [vmem:[%s3 + $0x18] sm:$0xff]
      %v373 = vld [vmem:[%s6] sm:$0x1]
      %v375 = vperm.slane %v373, 0
      %vm377 = vcmask 261120
      %v379 = vsel %vm377, %v368, 0
      %381 = vmatpush.msra.mxu0 0.0
      %382 = vmatpush.msra.mxu0 0.0
      %383 = vmatpush.msra.mxu0 0.0
      %384 = vmatpush.msra.mxu0 0.0
      %385 = vmatpush.msra.mxu0 0.0
      %386 = vmatpush.msra.mxu0 0.0
      %387 = vmatpush.msra.mxu0 0.0
      %388 = vmatpush.msra.mxu0 0.0
      %389 = vmatpush.msra.mxu0 0.0
      %390 = vmatpush.msra.mxu0 0.0
      %391 = vmatpush.msra.mxu0 0.0
      %392 = vmatpush.msra.mxu0 0.0
      %393 = vmatpush.msra.mxu0 %v372
      %394 = vmatpush.msra.mxu0 %v371
      %395 = vmatpush.msra.mxu0 %v370
      %396 = vmatpush.msra.mxu0 %v369
      %397 = vmatmul.f32.gmra.mxu0 %v379
      %v398 = vpop.f32.mrf.mxu0
      %v399 = vadd.f32 %v375, %v398
      %400 = vdwg.mxu0
      %v401 = vld [vmem:[%s4] sm:$0xff]
      %v402 = vld [vmem:[%s4 + $0x8] sm:$0xff]
      %v403 = vld [vmem:[%s4 + $0x10] sm:$0xff]
      %v404 = vld [vmem:[%s4 + $0x18] sm:$0xff]
      %v405 = vld [vmem:[%s7] sm:$0x1]
      %v407 = vperm.slane %v405, 0
      %409 = vmatpush.msra.mxu0 0.0
      %410 = vmatpush.msra.mxu0 0.0
      %411 = vmatpush.msra.mxu0 0.0
      %412 = vmatpush.msra.mxu0 0.0
      %413 = vmatpush.msra.mxu0 0.0
      %414 = vmatpush.msra.mxu0 0.0
      %415 = vmatpush.msra.mxu0 0.0
      %416 = vmatpush.msra.mxu0 0.0
      %417 = vmatpush.msra.mxu0 0.0
      %418 = vmatpush.msra.mxu0 0.0
      %419 = vmatpush.msra.mxu0 0.0
      %420 = vmatpush.msra.mxu0 0.0
      %421 = vmatpush.msra.mxu0 %v404
      %422 = vmatpush.msra.mxu0 %v403
      %423 = vmatpush.msra.mxu0 %v402
      %424 = vmatpush.msra.mxu0 %v401
      %425 = vmatmul.f32.gmra.mxu0 %v379
      %v426 = vpop.f32.mrf.mxu0
      %v427 = vadd.f32 %v407, %v426
      %428 = vdwg.mxu0
      %v429 = vld [vmem:[%s5] sm:$0xff]
      %v430 = vld [vmem:[%s5 + $0x8] sm:$0xff]
      %v431 = vld [vmem:[%s5 + $0x10] sm:$0xff]
      %v432 = vld [vmem:[%s5 + $0x18] sm:$0xff]
      %v433 = vld [vmem:[%s8] sm:$0x1]
      %v435 = vperm.slane %v433, 0
      %437 = vmatpush.msra.mxu0 0.0
      %438 = vmatpush.msra.mxu0 0.0
      %439 = vmatpush.msra.mxu0 0.0
      %440 = vmatpush.msra.mxu0 0.0
      %441 = vmatpush.msra.mxu0 0.0
      %442 = vmatpush.msra.mxu0 0.0
      %443 = vmatpush.msra.mxu0 0.0
      %444 = vmatpush.msra.mxu0 0.0
      %445 = vmatpush.msra.mxu0 0.0
      %446 = vmatpush.msra.mxu0 0.0
      %447 = vmatpush.msra.mxu0 0.0
      %448 = vmatpush.msra.mxu0 0.0
      %449 = vmatpush.msra.mxu0 %v432
      %450 = vmatpush.msra.mxu0 %v431
      %451 = vmatpush.msra.mxu0 %v430
      %452 = vmatpush.msra.mxu0 %v429
      %453 = vmatmul.f32.gmra.mxu0 %v379
      %v454 = vpop.f32.mrf.mxu0
      %v455 = vadd.f32 %v435, %v454
      %456 = vdwg.mxu0
      %v457 = vld [vmem:[%s349] sm:$0x3]
      %v458 = vadd.f32 %v457, %v399
      %v459 = vxor.u32 %v458, 2147483648
      %v460 = vmul.f32 %v459, 1.442695
      %v461 = vpow.pop %v460
      %v462 = vadd.f32 %v461, 1.0
      %v463 = vrcp.pop %v462
      %v464 = vmul.f32 %v462, %v463
      %v465 = vsub.f32 1.0, %v464
      %v466 = vmul.f32 %v463, %v465
      %v467 = vadd.f32 %v463, %v466
      %vm468 = vweird.f32 %v462
      %vm469 = vweird.f32 %v463
      %vm470 = vmor %vm468, %vm469
      %v471 = vsel %vm470, %v463, %v467
      %v472 = vand.u32 2147483647, %v462
      %vm473 = vcmp.eq.f32.partialorder %v472, 8.507059e+37
      %v474 = vand.u32 %v462, 2147483648
      %v475 = vor.u32 1.1754944e-38, %v474
      %v476 = vsel %vm473, %v475, %v471
      %v477 = vmul.f32 1.0, %v476
      %v478 = vld [vmem:[%s353] sm:$0x3]
      %v479 = vadd.f32 %v478, %v427
      %v480 = vxor.u32 %v479, 2147483648
      %v481 = vmul.f32 %v480, 1.442695
      %v482 = vpow.pop %v481
      %v483 = vadd.f32 %v482, 1.0
      %v484 = vrcp.pop %v483
      %v485 = vmul.f32 %v483, %v484
      %v486 = vsub.f32 1.0, %v485
      %v487 = vmul.f32 %v484, %v486
      %v488 = vadd.f32 %v484, %v487
      %vm489 = vweird.f32 %v483
      %vm490 = vweird.f32 %v484
      %vm491 = vmor %vm489, %vm490
      %v492 = vsel %vm491, %v484, %v488
      %v493 = vand.u32 2147483647, %v483
      %vm494 = vcmp.eq.f32.partialorder %v493, 8.507059e+37
      %v495 = vand.u32 %v483, 2147483648
      %v496 = vor.u32 1.1754944e-38, %v495
      %v497 = vsel %vm494, %v496, %v492
      %v498 = vmul.f32 1.0, %v497
      %v499 = vld [vmem:[%s357] sm:$0x3]
      %v500 = vmul.f32 %v477, %v455
      %v501 = vadd.f32 %v499, %v500
      %v502 = vtanh.pop %v501
      %v503 = vsub.f32 1.0, %v498
      %v504 = vmul.f32 %v503, %v502
      %v505 = vmul.f32 %v498, %v368
      %v506 = vadd.f32 %v504, %v505
      %vm507 = vcmask 254976
      %508 = vst.msk [vmem:[#allocation2] sm:$0x3] %vm507, %v506
      %509 = vst.msk [vmem:[%s361] sm:$0x3] %vm507, %v506
      %p510 = scmp.lt.s32.totalorder %s20, 7
      %s511 = scalar_select %p510, %s20, 7
      %s512 = smul.addr %s511, 2
      %s513 = scalar_lea.vmem %s9, %s512
      // Predicated region
      $region61: #{cpc_multitemporal_classifier_forward.4} parent=55 // pred_check
        %p514 = pneg %p242
      $region62: #{cpc_multitemporal_classifier_forward.4} parent=55 // pred_check_branch
        %516 = sbr.rel (%p514) target = $region64
      $region63: #{cpc_multitemporal_classifier_forward.4} parent=55 // pred_region
        _
      $region64: #{cpc_multitemporal_classifier_forward.4} parent=55 // pred_fallthru
        _
    $region56: #{cpc_multitemporal_classifier_forward.4} parent=5 // pred_fallthru
      _
    %p517 = scmp.le.s32.totalorder 2, %s15
    // Predicated region
    $region65: #{cpc_multitemporal_classifier_forward.4} parent=5 // pred_check
      %p518 = pneg %p517
    $region66: #{cpc_multitemporal_classifier_forward.4} parent=5 // pred_check_branch
      %520 = sbr.rel (%p518) target = $region68
    $region67: #{cpc_multitemporal_classifier_forward.4} parent=5 // pred_region
      %s521 = ssub.s32 %s15, 2
      // Predicated region
      $region69: #{cpc_multitemporal_classifier_forward.4} parent=67 // pred_check
        %p522 = pneg %p248
      $region70: #{cpc_multitemporal_classifier_forward.4} parent=67 // pred_check_branch
        %524 = sbr.rel (%p522) target = $region72
      $region71: #{cpc_multitemporal_classifier_forward.4} parent=67 // pred_region
        %p525 = scmp.lt.s32.totalorder %s21, 7
        %s526 = scalar_select %p525, %s21, 7
        %s527 = smul.addr %s526, 2
        %s528 = scalar_lea.vmem %s9, %s527
      $region72: #{cpc_multitemporal_classifier_forward.4} parent=67 // pred_fallthru
        _
    $region68: #{cpc_multitemporal_classifier_forward.4} parent=5 // pred_fallthru
      _
  $region6: #{cpc_multitemporal_classifier_forward.4} parent=0 // loop_footer
    %s19 = sadd.s32 1, %s15
  $region7: #{cpc_multitemporal_classifier_forward.4} parent=0 // loop_footer_branch
    %14 = sbr.rel target = $region3
  $region8: #{cpc_multitemporal_classifier_forward.4} parent=0 // loop_exit
    _

// kernel: cpc_multitemporal_classifier_forward.3
$region0: #{cpc_multitemporal_classifier_forward.3}
  #allocation0 [shape = 'u32[]', space=smem, size = 0x4, offset = 0x4, fixed_abs, tag = 'smem constant byte address 0x4 - core index']
  #allocation1 [shape = 'u32[72,128]{1,0:T(1,128)}', space=vmem, size = 0x9000, scoped, tag = 'internal scratch']
  %s0 = inlined_call_operand.vmem [shape: f32[16,1024], index: 0, kind: input, shape index: {}]
  %s1 = inlined_call_operand.vmem [shape: bf16[1024,128], index: 1, kind: input, shape index: {}]
  %s2 = inlined_call_operand.vmem [shape: f32[1,128], index: 2, kind: input, shape index: {}]
  %s3 = inlined_call_operand.vmem [shape: f32[16,128], index: 3, kind: output, shape index: {}]
  %s4 = sld [smem:[#allocation0]]
  $region22: #{cpc_multitemporal_classifier_forward.3} parent=0
    _
  %s6 = ssub.s32 1, %s4
  %s7 = scalar_select 0, %s6, %s4
  // Predicated region
  $region2: #{cpc_multitemporal_classifier_forward.3} parent=0 // pred_check
    _
  $region3: #{cpc_multitemporal_classifier_forward.3} parent=0 // pred_check_branch
    %9 = sbr.rel (0) target = $region5
  $region4: #{cpc_multitemporal_classifier_forward.3} parent=0 // pred_region
    _
  $region5: #{cpc_multitemporal_classifier_forward.3} parent=0 // pred_fallthru
    _
  // Predicated region
  $region6: #{cpc_multitemporal_classifier_forward.3} parent=0 // pred_check
    _
  $region7: #{cpc_multitemporal_classifier_forward.3} parent=0 // pred_check_branch
    %11 = sbr.rel (0) target = $region9
  $region8: #{cpc_multitemporal_classifier_forward.3} parent=0 // pred_region
    _
  $region9: #{cpc_multitemporal_classifier_forward.3} parent=0 // pred_fallthru
    _
  // Predicated region
  $region10: #{cpc_multitemporal_classifier_forward.3} parent=0 // pred_check
    _
  $region11: #{cpc_multitemporal_classifier_forward.3} parent=0 // pred_check_branch
    %13 = sbr.rel (0) target = $region13
  $region12: #{cpc_multitemporal_classifier_forward.3} parent=0 // pred_region
    _
  $region13: #{cpc_multitemporal_classifier_forward.3} parent=0 // pred_fallthru
    _
  %v14 = vld [vmem:[%s0] sm:$0xff]
  %v15 = vld [vmem:[%s0 + $0x8] sm:$0xff]
  %v16 = vld [vmem:[%s0 + $0x10] sm:$0xff]
  %v17 = vld [vmem:[%s0 + $0x18] sm:$0xff]
  %v18 = vld [vmem:[%s0 + $0x20] sm:$0xff]
  %v19 = vld [vmem:[%s0 + $0x28] sm:$0xff]
  %v20 = vld [vmem:[%s0 + $0x30] sm:$0xff]
  %v21 = vld [vmem:[%s0 + $0x38] sm:$0xff]
  %v22 = vld [vmem:[%s0 + $0x40] sm:$0xff]
  %v23 = vld [vmem:[%s0 + $0x48] sm:$0xff]
  %v24 = vld [vmem:[%s0 + $0x50] sm:$0xff]
  %v25 = vld [vmem:[%s0 + $0x58] sm:$0xff]
  %v26 = vld [vmem:[%s0 + $0x60] sm:$0xff]
  %v27 = vld [vmem:[%s0 + $0x68] sm:$0xff]
  %v28 = vld [vmem:[%s0 + $0x70] sm:$0xff]
  %v29 = vld [vmem:[%s0 + $0x78] sm:$0xff]
  %v30 = vpack.c.bf16 %v22, %v14
  %v31 = vpack.c.bf16 %v23, %v15
  %v32 = vpack.c.bf16 %v24, %v16
  %v33 = vpack.c.bf16 %v25, %v17
  %v34 = vpack.c.bf16 %v26, %v18
  %v35 = vpack.c.bf16 %v27, %v19
  %v36 = vpack.c.bf16 %v28, %v20
  %v37 = vpack.c.bf16 %v29, %v21
  %v38 = vld [vmem:[%s1] sm:$0xf]
  %v39 = vld [vmem:[%s1 + $0x4] sm:$0xf]
  %v40 = vld [vmem:[%s1 + $0x8] sm:$0xf]
  %v41 = vld [vmem:[%s1 + $0xc] sm:$0xf]
  %v42 = vld [vmem:[%s1 + $0x10] sm:$0xf]
  %v43 = vld [vmem:[%s1 + $0x14] sm:$0xf]
  %v44 = vld [vmem:[%s1 + $0x18] sm:$0xf]
  %v45 = vld [vmem:[%s1 + $0x1c] sm:$0xf]
  %v46 = vld [vmem:[%s1 + $0x20] sm:$0xf]
  %v47 = vld [vmem:[%s1 + $0x24] sm:$0xf]
  %v48 = vld [vmem:[%s1 + $0x28] sm:$0xf]
  %v49 = vld [vmem:[%s1 + $0x2c] sm:$0xf]
  %v50 = vld [vmem:[%s1 + $0x30] sm:$0xf]
  %v51 = vld [vmem:[%s1 + $0x34] sm:$0xf]
  %v52 = vld [vmem:[%s1 + $0x38] sm:$0xf]
  %v53 = vld [vmem:[%s1 + $0x3c] sm:$0xf]
  %v54 = vld [vmem:[%s1 + $0x40] sm:$0xf]
  %v55 = vld [vmem:[%s1 + $0x44] sm:$0xf]
  %v56 = vld [vmem:[%s1 + $0x48] sm:$0xf]
  %v57 = vld [vmem:[%s1 + $0x4c] sm:$0xf]
  %v58 = vld [vmem:[%s1 + $0x50] sm:$0xf]
  %v59 = vld [vmem:[%s1 + $0x54] sm:$0xf]
  %v60 = vld [vmem:[%s1 + $0x58] sm:$0xf]
  %v61 = vld [vmem:[%s1 + $0x5c] sm:$0xf]
  %v62 = vld [vmem:[%s1 + $0x60] sm:$0xf]
  %v63 = vld [vmem:[%s1 + $0x64] sm:$0xf]
  %v64 = vld [vmem:[%s1 + $0x68] sm:$0xf]
  %v65 = vld [vmem:[%s1 + $0x6c] sm:$0xf]
  %v66 = vld [vmem:[%s1 + $0x70] sm:$0xf]
  %v67 = vld [vmem:[%s1 + $0x74] sm:$0xf]
  %v68 = vld [vmem:[%s1 + $0x78] sm:$0xf]
  %v69 = vld [vmem:[%s1 + $0x7c] sm:$0xf]
  %v70 = vld [vmem:[%s1 + $0x80] sm:$0xf]
  %v71 = vld [vmem:[%s1 + $0x84] sm:$0xf]
  %v72 = vld [vmem:[%s1 + $0x88] sm:$0xf]
  %v73 = vld [vmem:[%s1 + $0x8c] sm:$0xf]
  %v74 = vld [vmem:[%s1 + $0x90] sm:$0xf]
  %v75 = vld [vmem:[%s1 + $0x94] sm:$0xf]
  %v76 = vld [vmem:[%s1 + $0x98] sm:$0xf]
  %v77 = vld [vmem:[%s1 + $0x9c] sm:$0xf]
  %v78 = vld [vmem:[%s1 + $0xa0] sm:$0xf]
  %v79 = vld [vmem:[%s1 + $0xa4] sm:$0xf]
  %v80 = vld [vmem:[%s1 + $0xa8] sm:$0xf]
  %v81 = vld [vmem:[%s1 + $0xac] sm:$0xf]
  %v82 = vld [vmem:[%s1 + $0xb0] sm:$0xf]
  %v83 = vld [vmem:[%s1 + $0xb4] sm:$0xf]
  %v84 = vld [vmem:[%s1 + $0xb8] sm:$0xf]
  %v85 = vld [vmem:[%s1 + $0xbc] sm:$0xf]
  %v86 = vld [vmem:[%s1 + $0xc0] sm:$0xf]
  %v87 = vld [vmem:[%s1 + $0xc4] sm:$0xf]
  %v88 = vld [vmem:[%s1 + $0xc8] sm:$0xf]
  %v89 = vld [vmem:[%s1 + $0xcc] sm:$0xf]
  %v90 = vld [vmem:[%s1 + $0xd0] sm:$0xf]
  %v91 = vld [vmem:[%s1 + $0xd4] sm:$0xf]
  %v92 = vld [vmem:[%s1 + $0xd8] sm:$0xf]
  %v93 = vld [vmem:[%s1 + $0xdc] sm:$0xf]
  %v94 = vld [vmem:[%s1 + $0xe0] sm:$0xf]
  %v95 = vld [vmem:[%s1 + $0xe4] sm:$0xf]
  %v96 = vld [vmem:[%s1 + $0xe8] sm:$0xf]
  %v97 = vld [vmem:[%s1 + $0xec] sm:$0xf]
  %v98 = vld [vmem:[%s1 + $0xf0] sm:$0xf]
  %v99 = vld [vmem:[%s1 + $0xf4] sm:$0xf]
  %v100 = vld [vmem:[%s1 + $0xf8] sm:$0xf]
  %v101 = vld [vmem:[%s1 + $0xfc] sm:$0xf]
  %v102 = vld [vmem:[%s1 + $0x100] sm:$0xf]
  %v103 = vld [vmem:[%s1 + $0x104] sm:$0xf]
  %v104 = vld [vmem:[%s1 + $0x108] sm:$0xf]
  %v105 = vld [vmem:[%s1 + $0x10c] sm:$0xf]
  %v106 = vld [vmem:[%s1 + $0x110] sm:$0xf]
  %v107 = vld [vmem:[%s1 + $0x114] sm:$0xf]
  %v108 = vld [vmem:[%s1 + $0x118] sm:$0xf]
  %v109 = vld [vmem:[%s1 + $0x11c] sm:$0xf]
  %v110 = vld [vmem:[%s1 + $0x120] sm:$0xf]
  %v111 = vld [vmem:[%s1 + $0x124] sm:$0xf]
  %v112 = vld [vmem:[%s1 + $0x128] sm:$0xf]
  %v113 = vld [vmem:[%s1 + $0x12c] sm:$0xf]
  %v114 = vld [vmem:[%s1 + $0x130] sm:$0xf]
  %v115 = vld [vmem:[%s1 + $0x134] sm:$0xf]
  %v116 = vld [vmem:[%s1 + $0x138] sm:$0xf]
  %v117 = vld [vmem:[%s1 + $0x13c] sm:$0xf]
  %v118 = vld [vmem:[%s1 + $0x140] sm:$0xf]
  %v119 = vld [vmem:[%s1 + $0x144] sm:$0xf]
  %v120 = vld [vmem:[%s1 + $0x148] sm:$0xf]
  %v121 = vld [vmem:[%s1 + $0x14c] sm:$0xf]
  %v122 = vld [vmem:[%s1 + $0x150] sm:$0xf]
  %v123 = vld [vmem:[%s1 + $0x154] sm:$0xf]
  %v124 = vld [vmem:[%s1 + $0x158] sm:$0xf]
  %v125 = vld [vmem:[%s1 + $0x15c] sm:$0xf]
  %v126 = vld [vmem:[%s1 + $0x160] sm:$0xf]
  %v127 = vld [vmem:[%s1 + $0x164] sm:$0xf]
  %v128 = vld [vmem:[%s1 + $0x168] sm:$0xf]
  %v129 = vld [vmem:[%s1 + $0x16c] sm:$0xf]
  %v130 = vld [vmem:[%s1 + $0x170] sm:$0xf]
  %v131 = vld [vmem:[%s1 + $0x174] sm:$0xf]
  %v132 = vld [vmem:[%s1 + $0x178] sm:$0xf]
  %v133 = vld [vmem:[%s1 + $0x17c] sm:$0xf]
  %v134 = vld [vmem:[%s1 + $0x180] sm:$0xf]
  %v135 = vld [vmem:[%s1 + $0x184] sm:$0xf]
  %v136 = vld [vmem:[%s1 + $0x188] sm:$0xf]
  %v137 = vld [vmem:[%s1 + $0x18c] sm:$0xf]
  %v138 = vld [vmem:[%s1 + $0x190] sm:$0xf]
  %v139 = vld [vmem:[%s1 + $0x194] sm:$0xf]
  %v140 = vld [vmem:[%s1 + $0x198] sm:$0xf]
  %v141 = vld [vmem:[%s1 + $0x19c] sm:$0xf]
  %v142 = vld [vmem:[%s1 + $0x1a0] sm:$0xf]
  %v143 = vld [vmem:[%s1 + $0x1a4] sm:$0xf]
  %v144 = vld [vmem:[%s1 + $0x1a8] sm:$0xf]
  %v145 = vld [vmem:[%s1 + $0x1ac] sm:$0xf]
  %v146 = vld [vmem:[%s1 + $0x1b0] sm:$0xf]
  %v147 = vld [vmem:[%s1 + $0x1b4] sm:$0xf]
  %v148 = vld [vmem:[%s1 + $0x1b8] sm:$0xf]
  %v149 = vld [vmem:[%s1 + $0x1bc] sm:$0xf]
  %v150 = vld [vmem:[%s1 + $0x1c0] sm:$0xf]
  %v151 = vld [vmem:[%s1 + $0x1c4] sm:$0xf]
  %v152 = vld [vmem:[%s1 + $0x1c8] sm:$0xf]
  %v153 = vld [vmem:[%s1 + $0x1cc] sm:$0xf]
  %v154 = vld [vmem:[%s1 + $0x1d0] sm:$0xf]
  %v155 = vld [vmem:[%s1 + $0x1d4] sm:$0xf]
  %v156 = vld [vmem:[%s1 + $0x1d8] sm:$0xf]
  %v157 = vld [vmem:[%s1 + $0x1dc] sm:$0xf]
  %v158 = vld [vmem:[%s1 + $0x1e0] sm:$0xf]
  %v159 = vld [vmem:[%s1 + $0x1e4] sm:$0xf]
  %v160 = vld [vmem:[%s1 + $0x1e8] sm:$0xf]
  %v161 = vld [vmem:[%s1 + $0x1ec] sm:$0xf]
  %v162 = vld [vmem:[%s1 + $0x1f0] sm:$0xf]
  %v163 = vld [vmem:[%s1 + $0x1f4] sm:$0xf]
  %v164 = vld [vmem:[%s1 + $0x1f8] sm:$0xf]
  %v165 = vld [vmem:[%s1 + $0x1fc] sm:$0xf]
  %v166 = vld [vmem:[%s2] sm:$0x1]
  %v168 = vperm.slane %v166, 0
  %v298 = vunpack.c.l.b16 %v38
  %v299 = vunpack.c.l.b16 %v39
  %v300 = vunpack.c.l.b16 %v40
  %v301 = vunpack.c.l.b16 %v41
  %v302 = vunpack.c.l.b16 %v42
  %v303 = vunpack.c.l.b16 %v43
  %v304 = vunpack.c.l.b16 %v44
  %v305 = vunpack.c.l.b16 %v45
  %v306 = vunpack.c.l.b16 %v46
  %v307 = vunpack.c.l.b16 %v47
  %v308 = vunpack.c.l.b16 %v48
  %v309 = vunpack.c.l.b16 %v49
  %v310 = vunpack.c.l.b16 %v50
  %v311 = vunpack.c.l.b16 %v51
  %v312 = vunpack.c.l.b16 %v52
  %v313 = vunpack.c.l.b16 %v53
  %v314 = vunpack.c.l.b16 %v54
  %v315 = vunpack.c.l.b16 %v55
  %v316 = vunpack.c.l.b16 %v56
  %v317 = vunpack.c.l.b16 %v57
  %v318 = vunpack.c.l.b16 %v58
  %v319 = vunpack.c.l.b16 %v59
  %v320 = vunpack.c.l.b16 %v60
  %v321 = vunpack.c.l.b16 %v61
  %v322 = vunpack.c.l.b16 %v62
  %v323 = vunpack.c.l.b16 %v63
  %v324 = vunpack.c.l.b16 %v64
  %v325 = vunpack.c.l.b16 %v65
  %v326 = vunpack.c.l.b16 %v66
  %v327 = vunpack.c.l.b16 %v67
  %v328 = vunpack.c.l.b16 %v68
  %v329 = vunpack.c.l.b16 %v69
  %v330 = vunpack.c.l.b16 %v70
  %v331 = vunpack.c.l.b16 %v71
  %v332 = vunpack.c.l.b16 %v72
  %v333 = vunpack.c.l.b16 %v73
  %v334 = vunpack.c.l.b16 %v74
  %v335 = vunpack.c.l.b16 %v75
  %v336 = vunpack.c.l.b16 %v76
  %v337 = vunpack.c.l.b16 %v77
  %v338 = vunpack.c.l.b16 %v78
  %v339 = vunpack.c.l.b16 %v79
  %v340 = vunpack.c.l.b16 %v80
  %v341 = vunpack.c.l.b16 %v81
  %v342 = vunpack.c.l.b16 %v82
  %v343 = vunpack.c.l.b16 %v83
  %v344 = vunpack.c.l.b16 %v84
  %v345 = vunpack.c.l.b16 %v85
  %v346 = vunpack.c.l.b16 %v86
  %v347 = vunpack.c.l.b16 %v87
  %v348 = vunpack.c.l.b16 %v88
  %v349 = vunpack.c.l.b16 %v89
  %v350 = vunpack.c.l.b16 %v90
  %v351 = vunpack.c.l.b16 %v91
  %v352 = vunpack.c.l.b16 %v92
  %v353 = vunpack.c.l.b16 %v93
  %v354 = vunpack.c.l.b16 %v94
  %v355 = vunpack.c.l.b16 %v95
  %v356 = vunpack.c.l.b16 %v96
  %v357 = vunpack.c.l.b16 %v97
  %v358 = vunpack.c.l.b16 %v98
  %v359 = vunpack.c.l.b16 %v99
  %v360 = vunpack.c.l.b16 %v100
  %v361 = vunpack.c.l.b16 %v101
  %v362 = vunpack.c.l.b16 %v102
  %v363 = vunpack.c.l.b16 %v103
  %v364 = vunpack.c.l.b16 %v104
  %v365 = vunpack.c.l.b16 %v105
  %v366 = vunpack.c.l.b16 %v106
  %v367 = vunpack.c.l.b16 %v107
  %v368 = vunpack.c.l.b16 %v108
  %v369 = vunpack.c.l.b16 %v109
  %v370 = vunpack.c.l.b16 %v110
  %v371 = vunpack.c.l.b16 %v111
  %v372 = vunpack.c.l.b16 %v112
  %v373 = vunpack.c.l.b16 %v113
  %v374 = vunpack.c.l.b16 %v114
  %v375 = vunpack.c.l.b16 %v115
  %v376 = vunpack.c.l.b16 %v116
  %v377 = vunpack.c.l.b16 %v117
  %v378 = vunpack.c.l.b16 %v118
  %v379 = vunpack.c.l.b16 %v119
  %v380 = vunpack.c.l.b16 %v120
  %v381 = vunpack.c.l.b16 %v121
  %v382 = vunpack.c.l.b16 %v122
  %v383 = vunpack.c.l.b16 %v123
  %v384 = vunpack.c.l.b16 %v124
  %v385 = vunpack.c.l.b16 %v125
  %v386 = vunpack.c.l.b16 %v126
  %v387 = vunpack.c.l.b16 %v127
  %v388 = vunpack.c.l.b16 %v128
  %v389 = vunpack.c.l.b16 %v129
  %v390 = vunpack.c.l.b16 %v130
  %v391 = vunpack.c.l.b16 %v131
  %v392 = vunpack.c.l.b16 %v132
  %v393 = vunpack.c.l.b16 %v133
  %v394 = vunpack.c.l.b16 %v134
  %v395 = vunpack.c.l.b16 %v135
  %v396 = vunpack.c.l.b16 %v136
  %v397 = vunpack.c.l.b16 %v137
  %v398 = vunpack.c.l.b16 %v138
  %v399 = vunpack.c.l.b16 %v139
  %v400 = vunpack.c.l.b16 %v140
  %v401 = vunpack.c.l.b16 %v141
  %v402 = vunpack.c.l.b16 %v142
  %v403 = vunpack.c.l.b16 %v143
  %v404 = vunpack.c.l.b16 %v144
  %v405 = vunpack.c.l.b16 %v145
  %v406 = vunpack.c.l.b16 %v146
  %v407 = vunpack.c.l.b16 %v147
  %v408 = vunpack.c.l.b16 %v148
  %v409 = vunpack.c.l.b16 %v149
  %v410 = vunpack.c.l.b16 %v150
  %v411 = vunpack.c.l.b16 %v151
  %v412 = vunpack.c.l.b16 %v152
  %v413 = vunpack.c.l.b16 %v153
  %v414 = vunpack.c.l.b16 %v154
  %v415 = vunpack.c.l.b16 %v155
  %v416 = vunpack.c.l.b16 %v156
  %v417 = vunpack.c.l.b16 %v157
  %v418 = vunpack.c.l.b16 %v158
  %v419 = vunpack.c.l.b16 %v159
  %v420 = vunpack.c.l.b16 %v160
  %v421 = vunpack.c.l.b16 %v161
  %v422 = vunpack.c.l.b16 %v162
  %v423 = vunpack.c.l.b16 %v163
  %v424 = vunpack.c.l.b16 %v164
  %v425 = vunpack.c.l.b16 %v165
  %v426 = vpack.c.b16 %v299, %v298
  %v427 = vpack.c.b16 %v301, %v300
  %v428 = vpack.c.b16 %v303, %v302
  %v429 = vpack.c.b16 %v305, %v304
  %v430 = vpack.c.b16 %v307, %v306
  %v431 = vpack.c.b16 %v309, %v308
  %v432 = vpack.c.b16 %v311, %v310
  %v433 = vpack.c.b16 %v313, %v312
  %v434 = vpack.c.b16 %v315, %v314
  %v435 = vpack.c.b16 %v317, %v316
  %v436 = vpack.c.b16 %v319, %v318
  %v437 = vpack.c.b16 %v321, %v320
  %v438 = vpack.c.b16 %v323, %v322
  %v439 = vpack.c.b16 %v325, %v324
  %v440 = vpack.c.b16 %v327, %v326
  %v441 = vpack.c.b16 %v329, %v328
  %v442 = vpack.c.b16 %v331, %v330
  %v443 = vpack.c.b16 %v333, %v332
  %v444 = vpack.c.b16 %v335, %v334
  %v445 = vpack.c.b16 %v337, %v336
  %v446 = vpack.c.b16 %v339, %v338
  %v447 = vpack.c.b16 %v341, %v340
  %v448 = vpack.c.b16 %v343, %v342
  %v449 = vpack.c.b16 %v345, %v344
  %v450 = vpack.c.b16 %v347, %v346
  %v451 = vpack.c.b16 %v349, %v348
  %v452 = vpack.c.b16 %v351, %v350
  %v453 = vpack.c.b16 %v353, %v352
  %v454 = vpack.c.b16 %v355, %v354
  %v455 = vpack.c.b16 %v357, %v356
  %v456 = vpack.c.b16 %v359, %v358
  %v457 = vpack.c.b16 %v361, %v360
  %v458 = vpack.c.b16 %v363, %v362
  %v459 = vpack.c.b16 %v365, %v364
  %v460 = vpack.c.b16 %v367, %v366
  %v461 = vpack.c.b16 %v369, %v368
  %v462 = vpack.c.b16 %v371, %v370
  %v463 = vpack.c.b16 %v373, %v372
  %v464 = vpack.c.b16 %v375, %v374
  %v465 = vpack.c.b16 %v377, %v376
  %v466 = vpack.c.b16 %v379, %v378
  %v467 = vpack.c.b16 %v381, %v380
  %v468 = vpack.c.b16 %v383, %v382
  %v469 = vpack.c.b16 %v385, %v384
  %v470 = vpack.c.b16 %v387, %v386
  %v471 = vpack.c.b16 %v389, %v388
  %v472 = vpack.c.b16 %v391, %v390
  %v473 = vpack.c.b16 %v393, %v392
  %v474 = vpack.c.b16 %v395, %v394
  %v475 = vpack.c.b16 %v397, %v396
  %v476 = vpack.c.b16 %v399, %v398
  %v477 = vpack.c.b16 %v401, %v400
  %v478 = vpack.c.b16 %v403, %v402
  %v479 = vpack.c.b16 %v405, %v404
  %v480 = vpack.c.b16 %v407, %v406
  %v481 = vpack.c.b16 %v409, %v408
  %v482 = vpack.c.b16 %v411, %v410
  %v483 = vpack.c.b16 %v413, %v412
  %v484 = vpack.c.b16 %v415, %v414
  %v485 = vpack.c.b16 %v417, %v416
  %v486 = vpack.c.b16 %v419, %v418
  %v487 = vpack.c.b16 %v421, %v420
  %v488 = vpack.c.b16 %v423, %v422
  %v489 = vpack.c.b16 %v425, %v424
  %554 = vmatpush.bf16.msra.mxu0 %v433
  %555 = vmatpush.bf16.msra.mxu0 %v432
  %556 = vmatpush.bf16.msra.mxu0 %v431
  %557 = vmatpush.bf16.msra.mxu0 %v430
  %558 = vmatpush.bf16.msra.mxu0 %v429
  %559 = vmatpush.bf16.msra.mxu0 %v428
  %560 = vmatpush.bf16.msra.mxu0 %v427
  %561 = vmatpush.bf16.msra.mxu0 %v426
  %562 = vmatmul.bf16.gmra.mxu0 %v30
  %v563 = vpop.f32.mrf.mxu0
  %v564 = vadd.f32 %v168, %v563
  %v565 = vpop.f32.mrf.mxu0
  %v566 = vadd.f32 %v168, %v565
  %567 = vdwg.mxu0
  %568 = vmatpush.bf16.msra.mxu0 %v441
  %569 = vmatpush.bf16.msra.mxu0 %v440
  %570 = vmatpush.bf16.msra.mxu0 %v439
  %571 = vmatpush.bf16.msra.mxu0 %v438
  %572 = vmatpush.bf16.msra.mxu0 %v437
  %573 = vmatpush.bf16.msra.mxu0 %v436
  %574 = vmatpush.bf16.msra.mxu0 %v435
  %575 = vmatpush.bf16.msra.mxu0 %v434
  %576 = vmatmul.bf16.gmra.mxu0 %v31
  %v577 = vpop.f32.mrf.mxu0
  %v578 = vadd.f32 %v564, %v577
  %v579 = vpop.f32.mrf.mxu0
  %v580 = vadd.f32 %v566, %v579
  %581 = vdwg.mxu0
  %582 = vmatpush.bf16.msra.mxu0 %v449
  %583 = vmatpush.bf16.msra.mxu0 %v448
  %584 = vmatpush.bf16.msra.mxu0 %v447
  %585 = vmatpush.bf16.msra.mxu0 %v446
  %586 = vmatpush.bf16.msra.mxu0 %v445
  %587 = vmatpush.bf16.msra.mxu0 %v444
  %588 = vmatpush.bf16.msra.mxu0 %v443
  %589 = vmatpush.bf16.msra.mxu0 %v442
  %590 = vmatmul.bf16.gmra.mxu0 %v32
  %v591 = vpop.f32.mrf.mxu0
  %v592 = vadd.f32 %v578, %v591
  %v593 = vpop.f32.mrf.mxu0
  %v594 = vadd.f32 %v580, %v593
  %595 = vdwg.mxu0
  %596 = vmatpush.bf16.msra.mxu0 %v457
  %597 = vmatpush.bf16.msra.mxu0 %v456
  %598 = vmatpush.bf16.msra.mxu0 %v455
  %599 = vmatpush.bf16.msra.mxu0 %v454
  %600 = vmatpush.bf16.msra.mxu0 %v453
  %601 = vmatpush.bf16.msra.mxu0 %v452
  %602 = vmatpush.bf16.msra.mxu0 %v451
  %603 = vmatpush.bf16.msra.mxu0 %v450
  %604 = vmatmul.bf16.gmra.mxu0 %v33
  %v605 = vpop.f32.mrf.mxu0
  %v606 = vadd.f32 %v592, %v605
  %v607 = vpop.f32.mrf.mxu0
  %v608 = vadd.f32 %v594, %v607
  %609 = vdwg.mxu0
  %610 = vmatpush.bf16.msra.mxu0 %v465
  %611 = vmatpush.bf16.msra.mxu0 %v464
  %612 = vmatpush.bf16.msra.mxu0 %v463
  %613 = vmatpush.bf16.msra.mxu0 %v462
  %614 = vmatpush.bf16.msra.mxu0 %v461
  %615 = vmatpush.bf16.msra.mxu0 %v460
  %616 = vmatpush.bf16.msra.mxu0 %v459
  %617 = vmatpush.bf16.msra.mxu0 %v458
  %618 = vmatmul.bf16.gmra.mxu0 %v34
  %v619 = vpop.f32.mrf.mxu0
  %v620 = vadd.f32 %v606, %v619
  %v621 = vpop.f32.mrf.mxu0
  %v622 = vadd.f32 %v608, %v621
  %623 = vdwg.mxu0
  %624 = vmatpush.bf16.msra.mxu0 %v473
  %625 = vmatpush.bf16.msra.mxu0 %v472
  %626 = vmatpush.bf16.msra.mxu0 %v471
  %627 = vmatpush.bf16.msra.mxu0 %v470
  %628 = vmatpush.bf16.msra.mxu0 %v469
  %629 = vmatpush.bf16.msra.mxu0 %v468
  %630 = vmatpush.bf16.msra.mxu0 %v467
  %631 = vmatpush.bf16.msra.mxu0 %v466
  %632 = vmatmul.bf16.gmra.mxu0 %v35
  %v633 = vpop.f32.mrf.mxu0
  %v634 = vadd.f32 %v620, %v633
  %v635 = vpop.f32.mrf.mxu0
  %v636 = vadd.f32 %v622, %v635
  %637 = vdwg.mxu0
  %638 = vmatpush.bf16.msra.mxu0 %v481
  %639 = vmatpush.bf16.msra.mxu0 %v480
  %640 = vmatpush.bf16.msra.mxu0 %v479
  %641 = vmatpush.bf16.msra.mxu0 %v478
  %642 = vmatpush.bf16.msra.mxu0 %v477
  %643 = vmatpush.bf16.msra.mxu0 %v476
  %644 = vmatpush.bf16.msra.mxu0 %v475
  %645 = vmatpush.bf16.msra.mxu0 %v474
  %646 = vmatmul.bf16.gmra.mxu0 %v36
  %v647 = vpop.f32.mrf.mxu0
  %v648 = vadd.f32 %v634, %v647
  %v649 = vpop.f32.mrf.mxu0
  %v650 = vadd.f32 %v636, %v649
  %651 = vdwg.mxu0
  %652 = vmatpush.bf16.msra.mxu0 %v489
  %653 = vmatpush.bf16.msra.mxu0 %v488
  %654 = vmatpush.bf16.msra.mxu0 %v487
  %655 = vmatpush.bf16.msra.mxu0 %v486
  %656 = vmatpush.bf16.msra.mxu0 %v485
  %657 = vmatpush.bf16.msra.mxu0 %v484
  %658 = vmatpush.bf16.msra.mxu0 %v483
  %659 = vmatpush.bf16.msra.mxu0 %v482
  %660 = vmatmul.bf16.gmra.mxu0 %v37
  %v661 = vpop.f32.mrf.mxu0
  %v662 = vadd.f32 %v648, %v661
  %v663 = vpop.f32.mrf.mxu0
  %v664 = vadd.f32 %v650, %v663
  %665 = vdwg.mxu0
  %v666 = vmax.f32 %v662, 0.0
  %v667 = vmax.f32 %v664, 0.0
  %668 = vst [vmem:[%s3] sm:$0xff] %v666
  %669 = vst [vmem:[%s3 + $0x8] sm:$0xff] %v667
  // Predicated region
  $region14: #{cpc_multitemporal_classifier_forward.3} parent=0 // pred_check
    _
  $region15: #{cpc_multitemporal_classifier_forward.3} parent=0 // pred_check_branch
    %671 = sbr.rel (0) target = $region17
  $region16: #{cpc_multitemporal_classifier_forward.3} parent=0 // pred_region
    _
  $region17: #{cpc_multitemporal_classifier_forward.3} parent=0 // pred_fallthru
    _
  // Predicated region
  $region18: #{cpc_multitemporal_classifier_forward.3} parent=0 // pred_check
    _
  $region19: #{cpc_multitemporal_classifier_forward.3} parent=0 // pred_check_branch
    %673 = sbr.rel (0) target = $region21
  $region20: #{cpc_multitemporal_classifier_forward.3} parent=0 // pred_region
    _
  $region21: #{cpc_multitemporal_classifier_forward.3} parent=0 // pred_fallthru
    _

// kernel: cpc_multitemporal_classifier_forward.5
$region0: #{cpc_multitemporal_classifier_forward.5}
  #allocation0 [shape = 'u32[]', space=smem, size = 0x4, offset = 0x4, fixed_abs, tag = 'smem constant byte address 0x4 - core index']
  #allocation1 [shape = 'u32[72,128]{1,0:T(1,128)}', space=vmem, size = 0x9000, scoped, tag = 'internal scratch']
  %s0 = inlined_call_operand.vmem [shape: f32[16,32], index: 0, kind: input, shape index: {}]
  %s1 = inlined_call_operand.vmem [shape: f32[16,32], index: 1, kind: input, shape index: {}]
  %s2 = inlined_call_operand.vmem [shape: f32[32,128], index: 2, kind: input, shape index: {}]
  %s3 = inlined_call_operand.vmem [shape: f32[32,128], index: 3, kind: input, shape index: {}]
  %s4 = inlined_call_operand.vmem [shape: f32[1,128], index: 4, kind: input, shape index: {}]
  %s5 = inlined_call_operand.vmem [shape: f32[1,128], index: 5, kind: input, shape index: {}]
  %s6 = inlined_call_operand.vmem [shape: f32[1,128], index: 6, kind: input, shape index: {}]
  %s7 = inlined_call_operand.vmem [shape: f32[128,128], index: 7, kind: input, shape index: {}]
  %s8 = inlined_call_operand.vmem [shape: f32[1,128], index: 8, kind: input, shape index: {}]
  %s9 = inlined_call_operand.vmem [shape: f32[16,128], index: 9, kind: output, shape index: {}]
  %s10 = sld [smem:[#allocation0]]
  $region46: #{cpc_multitemporal_classifier_forward.5} parent=0
    _
  %s12 = ssub.s32 1, %s10
  %s13 = scalar_select 0, %s12, %s10
  // Predicated region
  $region2: #{cpc_multitemporal_classifier_forward.5} parent=0 // pred_check
    _
  $region3: #{cpc_multitemporal_classifier_forward.5} parent=0 // pred_check_branch
    %15 = sbr.rel (0) target = $region5
  $region4: #{cpc_multitemporal_classifier_forward.5} parent=0 // pred_region
    _
  $region5: #{cpc_multitemporal_classifier_forward.5} parent=0 // pred_fallthru
    _
  // Predicated region
  $region6: #{cpc_multitemporal_classifier_forward.5} parent=0 // pred_check
    _
  $region7: #{cpc_multitemporal_classifier_forward.5} parent=0 // pred_check_branch
    %17 = sbr.rel (0) target = $region9
  $region8: #{cpc_multitemporal_classifier_forward.5} parent=0 // pred_region
    _
  $region9: #{cpc_multitemporal_classifier_forward.5} parent=0 // pred_fallthru
    _
  // Predicated region
  $region10: #{cpc_multitemporal_classifier_forward.5} parent=0 // pred_check
    _
  $region11: #{cpc_multitemporal_classifier_forward.5} parent=0 // pred_check_branch
    %19 = sbr.rel (0) target = $region13
  $region12: #{cpc_multitemporal_classifier_forward.5} parent=0 // pred_region
    _
  $region13: #{cpc_multitemporal_classifier_forward.5} parent=0 // pred_fallthru
    _
  // Predicated region
  $region14: #{cpc_multitemporal_classifier_forward.5} parent=0 // pred_check
    _
  $region15: #{cpc_multitemporal_classifier_forward.5} parent=0 // pred_check_branch
    %21 = sbr.rel (0) target = $region17
  $region16: #{cpc_multitemporal_classifier_forward.5} parent=0 // pred_region
    _
  $region17: #{cpc_multitemporal_classifier_forward.5} parent=0 // pred_fallthru
    _
  // Predicated region
  $region18: #{cpc_multitemporal_classifier_forward.5} parent=0 // pred_check
    _
  $region19: #{cpc_multitemporal_classifier_forward.5} parent=0 // pred_check_branch
    %23 = sbr.rel (0) target = $region21
  $region20: #{cpc_multitemporal_classifier_forward.5} parent=0 // pred_region
    _
  $region21: #{cpc_multitemporal_classifier_forward.5} parent=0 // pred_fallthru
    _
  // Predicated region
  $region22: #{cpc_multitemporal_classifier_forward.5} parent=0 // pred_check
    _
  $region23: #{cpc_multitemporal_classifier_forward.5} parent=0 // pred_check_branch
    %25 = sbr.rel (0) target = $region25
  $region24: #{cpc_multitemporal_classifier_forward.5} parent=0 // pred_region
    _
  $region25: #{cpc_multitemporal_classifier_forward.5} parent=0 // pred_fallthru
    _
  // Predicated region
  $region26: #{cpc_multitemporal_classifier_forward.5} parent=0 // pred_check
    _
  $region27: #{cpc_multitemporal_classifier_forward.5} parent=0 // pred_check_branch
    %27 = sbr.rel (0) target = $region29
  $region28: #{cpc_multitemporal_classifier_forward.5} parent=0 // pred_region
    _
  $region29: #{cpc_multitemporal_classifier_forward.5} parent=0 // pred_fallthru
    _
  // Predicated region
  $region30: #{cpc_multitemporal_classifier_forward.5} parent=0 // pred_check
    _
  $region31: #{cpc_multitemporal_classifier_forward.5} parent=0 // pred_check_branch
    %29 = sbr.rel (0) target = $region33
  $region32: #{cpc_multitemporal_classifier_forward.5} parent=0 // pred_region
    _
  $region33: #{cpc_multitemporal_classifier_forward.5} parent=0 // pred_fallthru
    _
  // Predicated region
  $region34: #{cpc_multitemporal_classifier_forward.5} parent=0 // pred_check
    _
  $region35: #{cpc_multitemporal_classifier_forward.5} parent=0 // pred_check_branch
    %31 = sbr.rel (0) target = $region37
  $region36: #{cpc_multitemporal_classifier_forward.5} parent=0 // pred_region
    _
  $region37: #{cpc_multitemporal_classifier_forward.5} parent=0 // pred_fallthru
    _
  %v33 = vld [vmem:[%s0] sm:$0xff]
  %v34 = vld [vmem:[%s0 + $0x8] sm:$0xff]
  %v35 = vpack.c.bf16 %v34, %v33
  %v36 = vld [vmem:[%s1] sm:$0xff]
  %v37 = vld [vmem:[%s1 + $0x8] sm:$0xff]
  %v38 = vpack.c.bf16 %v37, %v36
  %v39 = vld [vmem:[%s2] sm:$0xff]
  %v40 = vld [vmem:[%s2 + $0x8] sm:$0xff]
  %v41 = vld [vmem:[%s2 + $0x10] sm:$0xff]
  %v42 = vld [vmem:[%s2 + $0x18] sm:$0xff]
  %v43 = vpack.c.bf16 %v40, %v39
  %v44 = vpack.c.bf16 %v42, %v41
  %v45 = vld [vmem:[%s3] sm:$0xff]
  %v46 = vld [vmem:[%s3 + $0x8] sm:$0xff]
  %v47 = vld [vmem:[%s3 + $0x10] sm:$0xff]
  %v48 = vld [vmem:[%s3 + $0x18] sm:$0xff]
  %v49 = vpack.c.bf16 %v46, %v45
  %v50 = vpack.c.bf16 %v48, %v47
  %vm51 = vcmask 261120
  %v53 = vsel %vm51, %v38, 0
  %55 = vmatpush.bf16.msra.mxu0 0
  %56 = vmatpush.bf16.msra.mxu0 0
  %57 = vmatpush.bf16.msra.mxu0 0
  %58 = vmatpush.bf16.msra.mxu0 0
  %59 = vmatpush.bf16.msra.mxu0 0
  %60 = vmatpush.bf16.msra.mxu0 0
  %61 = vmatpush.bf16.msra.mxu0 %v50
  %62 = vmatpush.bf16.msra.mxu0 %v49
  %63 = vmatmul.bf16.gmra.mxu0 %v53
  %v64 = vpop.f32.mrf.mxu0
  %v65 = vadd.f32 0.0, %v64
  %v66 = vpop.f32.mrf.mxu0
  %v67 = vadd.f32 0.0, %v66
  %68 = vdwg.mxu0
  %v70 = vsel %vm51, %v35, 0
  %72 = vmatpush.bf16.msra.mxu0 0
  %73 = vmatpush.bf16.msra.mxu0 0
  %74 = vmatpush.bf16.msra.mxu0 0
  %75 = vmatpush.bf16.msra.mxu0 0
  %76 = vmatpush.bf16.msra.mxu0 0
  %77 = vmatpush.bf16.msra.mxu0 0
  %78 = vmatpush.bf16.msra.mxu0 %v44
  %79 = vmatpush.bf16.msra.mxu0 %v43
  %80 = vmatmul.bf16.gmra.mxu0 %v70
  %v81 = vpop.f32.mrf.mxu0
  %v82 = vadd.f32 %v65, %v81
  %v83 = vpop.f32.mrf.mxu0
  %v84 = vadd.f32 %v67, %v83
  %85 = vdwg.mxu0
  %v86 = vld [vmem:[%s4] sm:$0x1]
  %v88 = vperm.slane %v86, 0
  %v90 = vadd.f32 %v82, %v88
  %v91 = vadd.f32 %v84, %v88
  %v92 = vadd.f32 %v90, %v91
  %v93 = vrot.slane %v92, 4
  %v94 = vadd.f32 %v92, %v93
  %v95 = vrot.slane %v94, 2
  %v96 = vadd.f32 %v94, %v95
  %v97 = vrot.slane %v96, 1
  %v98 = vadd.f32 %v96, %v97
  %v99 = vmul.f32 %v98, 0.0625
  %v100 = vsub.f32 %v90, %v99
  %v101 = vsub.f32 %v91, %v99
  %v102 = vmul.f32 %v100, %v100
  %v103 = vmul.f32 %v101, %v101
  %v104 = vadd.f32 %v102, %v103
  %v105 = vrot.slane %v104, 4
  %v106 = vadd.f32 %v104, %v105
  %v107 = vrot.slane %v106, 2
  %v108 = vadd.f32 %v106, %v107
  %v109 = vrot.slane %v108, 1
  %v110 = vadd.f32 %v108, %v109
  %v111 = vmul.f32 %v110, 0.0625
  %v112 = vadd.f32 %v111, 1e-05
  %v113 = vrsqrt.pop %v112
  %v114 = vmul.f32 %v113, %v112
  %v115 = vmul.f32 %v114, %v113
  %v116 = vmul.f32 0.5, %v115
  %v117 = vsub.f32 1.5, %v116
  %v118 = vmul.f32 %v113, %v117
  %vm119 = vweird.f32 %v112
  %vm120 = vweird.f32 %v113
  %vm121 = vmor %vm119, %vm120
  %v122 = vsel %vm121, %v113, %v118
  %v123 = vld [vmem:[%s5] sm:$0x1]
  %v124 = vmul.f32 %v122, %v123
  %v125 = vperm.slane %v124, 0
  %v126 = vmul.f32 %v100, %v125
  %v127 = vmul.f32 %v101, %v125
  %v128 = vld [vmem:[%s6] sm:$0x1]
  %v130 = vperm.slane %v128, 0
  %v132 = vadd.f32 %v126, %v130
  %v133 = vadd.f32 %v127, %v130
  %v134 = vmax.f32 %v132, 0.0
  %v135 = vmax.f32 %v133, 0.0
  %v136 = vpack.c.bf16 %v135, %v134
  %v137 = vld [vmem:[%s7] sm:$0xff]
  %v138 = vld [vmem:[%s7 + $0x8] sm:$0xff]
  %v139 = vld [vmem:[%s7 + $0x10] sm:$0xff]
  %v140 = vld [vmem:[%s7 + $0x18] sm:$0xff]
  %v141 = vld [vmem:[%s7 + $0x20] sm:$0xff]
  %v142 = vld [vmem:[%s7 + $0x28] sm:$0xff]
  %v143 = vld [vmem:[%s7 + $0x30] sm:$0xff]
  %v144 = vld [vmem:[%s7 + $0x38] sm:$0xff]
  %v145 = vld [vmem:[%s7 + $0x40] sm:$0xff]
  %v146 = vld [vmem:[%s7 + $0x48] sm:$0xff]
  %v147 = vld [vmem:[%s7 + $0x50] sm:$0xff]
  %v148 = vld [vmem:[%s7 + $0x58] sm:$0xff]
  %v149 = vld [vmem:[%s7 + $0x60] sm:$0xff]
  %v150 = vld [vmem:[%s7 + $0x68] sm:$0xff]
  %v151 = vld [vmem:[%s7 + $0x70] sm:$0xff]
  %v152 = vld [vmem:[%s7 + $0x78] sm:$0xff]
  %v153 = vpack.c.bf16 %v138, %v137
  %v154 = vpack.c.bf16 %v140, %v139
  %v155 = vpack.c.bf16 %v142, %v141
  %v156 = vpack.c.bf16 %v144, %v143
  %v157 = vpack.c.bf16 %v146, %v145
  %v158 = vpack.c.bf16 %v148, %v147
  %v159 = vpack.c.bf16 %v150, %v149
  %v160 = vpack.c.bf16 %v152, %v151
  %v161 = vld [vmem:[%s8] sm:$0x1]
  %v163 = vperm.slane %v161, 0
  %165 = vmatpush.bf16.msra.mxu0 %v160
  %166 = vmatpush.bf16.msra.mxu0 %v159
  %167 = vmatpush.bf16.msra.mxu0 %v158
  %168 = vmatpush.bf16.msra.mxu0 %v157
  %169 = vmatpush.bf16.msra.mxu0 %v156
  %170 = vmatpush.bf16.msra.mxu0 %v155
  %171 = vmatpush.bf16.msra.mxu0 %v154
  %172 = vmatpush.bf16.msra.mxu0 %v153
  %173 = vmatmul.bf16.gmra.mxu0 %v136
  %v174 = vpop.f32.mrf.mxu0
  %v175 = vadd.f32 %v163, %v174
  %v176 = vpop.f32.mrf.mxu0
  %v177 = vadd.f32 %v163, %v176
  %178 = vdwg.mxu0
  %179 = vst [vmem:[%s9] sm:$0xff] %v175
  %180 = vst [vmem:[%s9 + $0x8] sm:$0xff] %v177
  // Predicated region
  $region38: #{cpc_multitemporal_classifier_forward.5} parent=0 // pred_check
    _
  $region39: #{cpc_multitemporal_classifier_forward.5} parent=0 // pred_check_branch
    %182 = sbr.rel (0) target = $region41
  $region40: #{cpc_multitemporal_classifier_forward.5} parent=0 // pred_region
    _
  $region41: #{cpc_multitemporal_classifier_forward.5} parent=0 // pred_fallthru
    _
  // Predicated region
  $region42: #{cpc_multitemporal_classifier_forward.5} parent=0 // pred_check
    _
  $region43: #{cpc_multitemporal_classifier_forward.5} parent=0 // pred_check_branch
    %184 = sbr.rel (0) target = $region45
  $region44: #{cpc_multitemporal_classifier_forward.5} parent=0 // pred_region
    _
  $region45: #{cpc_multitemporal_classifier_forward.5} parent=0 // pred_fallthru
    _

</llo_original>
